<compile_context>
chip_gen: v7x
topology: tpu7x:2x2x1
jax: 0.10.0
libtpu: 0.0.40
codegen_flags: <defaults>
</compile_context>

<pallas_src>
import numpy as np
import jax
import jax.numpy as jnp
from jax.experimental import pallas as pl
from jax.experimental.pallas import tpu as pltpu


def _bilinear_matrix_align_corners(out_size: int, in_size: int) -> np.ndarray:
    """Interpolation matrix R (out_size, in_size) for align_corners=True."""
    R = np.zeros((out_size, in_size), dtype=np.float32)
    if in_size == 1:
        R[:, 0] = 1.0
        return R
    scale = (in_size - 1) / (out_size - 1) if out_size > 1 else 0.0
    for i in range(out_size):
        src = i * scale
        lo = min(int(np.floor(src)), in_size - 2)
        frac = src - lo
        R[i, lo] = 1.0 - frac
        R[i, lo + 1] = frac
    return R


def _dsclrcn_head_kernel(feat_ref, wpad_ref, mask_ref, rsel_ref, rh_ref, rwT_ref,
                         out_ref):
    # feat_ref : (1, BN*S, C) bf16  channels-last local features, BN images stacked
    # wpad_ref : (C, 128)     bf16  1x1-conv weight in column 0, zero elsewhere
    # mask_ref : (S, W_lf)    bf16  lane scatter  : mask[s, w] = (s %  W_lf == w)
    # rsel_ref : (H_lf, S)    bf16  row  collapse : rsel[h, s] = (s // W_lf == h)
    # rh_ref   : (H, H_lf)    bf16  row bilinear interp (align_corners=True)
    # rwT_ref  : (W_lf, W)    bf16  column bilinear interp (transposed)
    # out_ref  : (BN, H, W)   f32   per-image softmax over the H*W saliency map
    BN = out_ref.shape[0]
    S = mask_ref.shape[0]

    # (1) 1x1 conv (512 -> 1): ONE stacked MXU matmul for the whole batch block
    #     (column 0 of the result holds the conv value for every spatial row).
    conv = jnp.dot(feat_ref[0], wpad_ref[...],
                   preferred_element_type=jnp.float32)              # (BN*S, 128)

    mask = mask_ref[...]
    rsel = rsel_ref[...]
    rh = rh_ref[...]
    rwT = rwT_ref[...]

    # BN is small (2) -> static unroll.  For larger BN switch to lax.fori_loop
    # so the per-image (H, W) intermediates do not stay live simultaneously.
    for i in range(BN):
        c_i = conv[i * S:(i + 1) * S, 0:1].astype(jnp.bfloat16)     # (S, 1)

        # (2) Reshape-free flat -> (H_lf, W_lf) relayout: scatter the conv
        #     column across W_lf lanes with a 0/1 mask, then collapse groups of
        #     W_lf rows with a 0/1 matmul.  Exact (mask/rsel entries are 0/1).
        scat = c_i * mask                                           # (S, W_lf)
        cmap = jnp.dot(rsel, scat,
                       preferred_element_type=jnp.float32)          # (H_lf, W_lf)

        # (3) Separable bilinear upsample (align_corners=True): two small matmuls.
        rows = jnp.dot(rh, cmap.astype(jnp.bfloat16),
                       preferred_element_type=jnp.float32)          # (H, W_lf)
        up = jnp.dot(rows.astype(jnp.bfloat16), rwT,
                     preferred_element_type=jnp.float32)            # (H, W)
        # (last_conv bias omitted: softmax is shift-invariant, so adding a
        #  uniform scalar to every logit is a mathematical no-op.)

        # (4) Numerically-stable softmax over the whole spatial map, per image.
        m = jnp.max(up)
        e = jnp.exp(up - m)
        s = jnp.sum(e, axis=-1, keepdims=True)                      # (H, 1)
        s = jnp.sum(s, axis=0, keepdims=True)                       # (1, 1)
        out_ref[i] = (e * pl.reciprocal(s, approx=False)).astype(out_ref.dtype)


def dsclrcn_nolstm_head(local_feats_nhwc, w_conv, b_conv, out_hw, *, batch_block=2):
    """local_feats_nhwc: (N, H_lf, W_lf, 512) -> (N, 1, H, W) saliency softmax.

    `b_conv` is accepted for interface parity with nn.Conv2d(512, 1, 1) but is
    unused: the softmax over the upsampled map is invariant to the uniform shift.
    """
    del b_conv  # softmax shift-invariance (see review)
    N, H_lf, W_lf, C = local_feats_nhwc.shape
    H, W = out_hw
    S = H_lf * W_lf
    BN = batch_block
    assert N % BN == 0, "batch must be divisible by batch_block"
    NPAD = 128

    # Channels-last features, BN images stacked along the sublane axis.  The
    # reshape is a free contiguous view; the backbone already emits bf16 so no
    # standalone f32->bf16 HBM round trip is introduced here.
    feat = local_feats_nhwc.reshape(N // BN, BN * S, C)
    if feat.dtype != jnp.bfloat16:
        feat = feat.astype(jnp.bfloat16)  # TODO(synk): fuse into the backbone's last op

    # 1x1-conv weight, zero-padded to a lane-aligned (C, 128) RHS (column 0).
    wpad_np = np.zeros((C, NPAD), dtype=np.float32)
    wpad_np[:, 0] = np.asarray(w_conv, dtype=np.float32).reshape(C)
    wpad = jnp.asarray(wpad_np, dtype=jnp.bfloat16)

    # Exact 0/1 scatter / collapse matrices for the flat -> (H_lf, W_lf) relayout.
    s_idx = np.arange(S)
    mask = jnp.asarray(s_idx[:, None] % W_lf == np.arange(W_lf)[None, :],
                       dtype=jnp.bfloat16)                           # (S, W_lf)
    rsel = jnp.asarray(s_idx[None, :] // W_lf == np.arange(H_lf)[:, None],
                       dtype=jnp.bfloat16)                           # (H_lf, S)

    # Separable bilinear interpolation matrices (align_corners=True), bf16.
    rh = jnp.asarray(_bilinear_matrix_align_corners(H, H_lf), dtype=jnp.bfloat16)
    rwT = jnp.asarray(_bilinear_matrix_align_corners(W, W_lf).T, dtype=jnp.bfloat16)

    def _resident(shape):
        # Constant-index-map operand: stays in VMEM across all grid steps, so a
        # single buffer suffices (fallback for Pallas versions without pipeline_mode).
        idx = lambda n: (0,) * len(shape)
        if hasattr(pl, "Buffered"):
            try:
                return pl.BlockSpec(shape, idx, pipeline_mode=pl.Buffered(1))
            except TypeError:
                pass
        return pl.BlockSpec(shape, idx)

    feat_block = (1, BN * S, C)
    out_block = (BN, H, W)

    # vmem limit computed from the actual block sizes (2x-buffered streaming
    # blocks + single-buffered resident operands) plus margin for in-kernel
    # intermediates / compiler scratch.
    resident_bytes = sum(int(a.size) * a.dtype.itemsize
                         for a in (wpad, mask, rsel, rh, rwT))
    vmem_limit = (2 * int(np.prod(feat_block)) * 2 +       # bf16 features, 2 buffers
                  2 * int(np.prod(out_block)) * 4 +        # f32 output, 2 buffers
                  resident_bytes + (8 << 20))

    out = pl.pallas_call(
        _dsclrcn_head_kernel,
        out_shape=jax.ShapeDtypeStruct((N, H, W), jnp.float32),
        grid=(N // BN,),
        in_specs=[
            pl.BlockSpec(feat_block, lambda n: (n, 0, 0)),   # streamed features
            _resident(wpad.shape),
            _resident(mask.shape),
            _resident(rsel.shape),
            _resident(rh.shape),
            _resident(rwT.shape),
        ],
        out_specs=pl.BlockSpec(out_block, lambda n: (n, 0, 0)),   # lane-dense stores
        compiler_params=pltpu.CompilerParams(
            dimension_semantics=("parallel",),     # shard grid steps across TCs
            vmem_limit_bytes=int(vmem_limit),
        ),
    )(feat, wpad, mask, rsel, rh, rwT)

    return out.reshape(N, 1, H, W)


def local_feats_standin(x_nchw, proj_w, proj_b, pool=8):
    """Deterministic stand-in for SegmentationNN: pool x pool avg-pool + 1x1 conv
    (Cin->512) + ReLU, emitted channels-last in bf16 (the layout/dtype the Pallas
    head consumes, so no extra cast/transpose pass is needed)."""
    # TODO(synk): SegmentationNN / LocalFeatsCNN backbone is external to the
    # module source and not provided; this stand-in only reproduces its
    # 512-channel, 8x-reduced local-features contract (channels-last here).
    x = jnp.transpose(x_nchw, (0, 2, 3, 1))                                  # NHWC
    N, H, W, Cin = x.shape
    pooled = x.reshape(N, H // pool, pool, W // pool, pool, Cin).mean(axis=(2, 4))
    feats = jnp.maximum(jnp.einsum('nhwc,cd->nhwd', pooled, proj_w) + proj_b, 0.0)
    return feats.astype(jnp.bfloat16)                                        # (N, H/p, W/p, 512)


def _reference_head(feats_nhwc, w_conv, b_conv, rh, rwT):
    """Plain-JAX f32 reference: 1x1 conv (+bias) -> bilinear (align_corners=True) -> softmax."""
    conv = jnp.einsum('nhwc,c->nhw', feats_nhwc.astype(jnp.float32),
                      w_conv.reshape(-1).astype(jnp.float32)) + b_conv[0]
    up = jnp.einsum('Hh,nhw,wW->nHW', rh, conv, rwT)
    n, Ho, Wo = up.shape
    p = jax.nn.softmax(up.reshape(n, -1), axis=-1)
    return p.reshape(n, 1, Ho, Wo)


if __name__ == "__main__":
    key = jax.random.PRNGKey(0)
    k_x, k_pw, k_pb, k_w, k_b = jax.random.split(key, 5)

    # Small shapes consistent with the module: NCHW image input, 512-channel
    # local features at 8x reduced resolution, bilinear upsample to input_dim.
    # W = 128 keeps output stores lane-dense (real model's W = 640 = 5*128).
    N, Cin = 8, 3
    H, W = 32, 128
    C_FEAT = 512                      # last_conv expects 512 input channels
    POOL = 8
    BN = 2                            # 2 images / grid step -> 4 grid steps

    x = jax.random.normal(k_x, (N, Cin, H, W), dtype=jnp.float32)
    proj_w = 0.05 * jax.random.normal(k_pw, (Cin, C_FEAT), dtype=jnp.float32)
    proj_b = 0.01 * jax.random.normal(k_pb, (C_FEAT,), dtype=jnp.float32)
    last_conv_w = 0.02 * jax.random.normal(k_w, (C_FEAT,), dtype=jnp.float32)
    last_conv_b = 0.01 * jax.random.normal(k_b, (1,), dtype=jnp.float32)

    feats = local_feats_standin(x, proj_w, proj_b, pool=POOL)      # (8, 4, 16, 512) bf16
    out = dsclrcn_nolstm_head(feats, last_conv_w, last_conv_b, (H, W),
                              batch_block=BN)
    out = jax.block_until_ready(out)

    assert out.shape == (N, 1, H, W)

    # Each image's softmax must sum to 1 (exact reciprocal -> tight tolerance).
    sums = np.asarray(out, dtype=np.float64).reshape(N, -1).sum(axis=1)
    assert np.allclose(sums, 1.0, atol=1e-3), sums

    # Cross-check against a plain-JAX f32 reference of the same head (including
    # the conv bias, which the kernel drops thanks to softmax shift-invariance).
    H_lf, W_lf = feats.shape[1], feats.shape[2]
    rh_ref = jnp.asarray(_bilinear_matrix_align_corners(H, H_lf))
    rwT_ref = jnp.asarray(_bilinear_matrix_align_corners(W, W_lf).T)
    ref = _reference_head(feats, last_conv_w, last_conv_b, rh_ref, rwT_ref)
    np.testing.assert_allclose(np.asarray(out), np.asarray(ref), rtol=3e-2, atol=1e-6)

    print("KERNEL_OK")
</pallas_src>

<mosaic_0001>
module attributes {stable_mosaic.version = 11 : i64} {
  func.func @_dsclrcn_head_kernel(%arg0: i32, %arg1: memref<1x128x512xbf16, #tpu.memory_space<vmem>>, %arg2: memref<512x128xbf16, #tpu.memory_space<vmem>>, %arg3: memref<64x16xbf16, #tpu.memory_space<vmem>>, %arg4: memref<4x64xbf16, #tpu.memory_space<vmem>>, %arg5: memref<32x4xbf16, #tpu.memory_space<vmem>>, %arg6: memref<16x128xbf16, #tpu.memory_space<vmem>>, %arg7: memref<2x32x128xf32, #tpu.memory_space<vmem>>) attributes {dimension_semantics = [#tpu.dimension_semantics<parallel>], iteration_bounds = array<i64: 4>, scalar_prefetch = 0 : i64, scratch_operands = 0 : i64, tpu.core_type = #tpu.core_type<tc>, window_params = [{transform_indices = @transform_0, window_bounds = array<i64: 1, 128, 512>}, {pipeline_mode = #tpu.pipeline_mode<synchronous>, transform_indices = @transform_1, window_bounds = array<i64: 512, 128>}, {pipeline_mode = #tpu.pipeline_mode<synchronous>, transform_indices = @transform_2, window_bounds = array<i64: 64, 16>}, {pipeline_mode = #tpu.pipeline_mode<synchronous>, transform_indices = @transform_3, window_bounds = array<i64: 4, 64>}, {pipeline_mode = #tpu.pipeline_mode<synchronous>, transform_indices = @transform_4, window_bounds = array<i64: 32, 4>}, {pipeline_mode = #tpu.pipeline_mode<synchronous>, transform_indices = @transform_5, window_bounds = array<i64: 16, 128>}, {transform_indices = @transform_6, window_bounds = array<i64: 2, 32, 128>}]} {
    %c0 = arith.constant 0 : index
    %c0_0 = arith.constant 0 : index
    %c0_1 = arith.constant 0 : index
    %0 = vector.load %arg1[%c0, %c0_0, %c0_1] : memref<1x128x512xbf16, #tpu.memory_space<vmem>>, vector<1x128x512xbf16>
    %1 = vector.shape_cast %0 : vector<1x128x512xbf16> to vector<128x512xbf16>
    %c0_2 = arith.constant 0 : index
    %c0_3 = arith.constant 0 : index
    %2 = vector.load %arg2[%c0_2, %c0_3] : memref<512x128xbf16, #tpu.memory_space<vmem>>, vector<512x128xbf16>
    %cst = arith.constant dense<0.000000e+00> : vector<128x128xf32>
    %3 = tpu.matmul %1, %2, %cst {dimension_numbers = #tpu.dot_dimension_numbers<[1], [0], [0], [1], [0, 0, 1, 1], [], []>} : vector<128x512xbf16>, vector<512x128xbf16>, vector<128x128xf32> -> vector<128x128xf32>
    %c0_4 = arith.constant 0 : index
    %c0_5 = arith.constant 0 : index
    %4 = vector.load %arg3[%c0_4, %c0_5] : memref<64x16xbf16, #tpu.memory_space<vmem>>, vector<64x16xbf16>
    %c0_6 = arith.constant 0 : index
    %c0_7 = arith.constant 0 : index
    %5 = vector.load %arg4[%c0_6, %c0_7] : memref<4x64xbf16, #tpu.memory_space<vmem>>, vector<4x64xbf16>
    %c0_8 = arith.constant 0 : index
    %c0_9 = arith.constant 0 : index
    %6 = vector.load %arg5[%c0_8, %c0_9] : memref<32x4xbf16, #tpu.memory_space<vmem>>, vector<32x4xbf16>
    %c0_10 = arith.constant 0 : index
    %c0_11 = arith.constant 0 : index
    %7 = vector.load %arg6[%c0_10, %c0_11] : memref<16x128xbf16, #tpu.memory_space<vmem>>, vector<16x128xbf16>
    %8 = vector.extract_strided_slice %3 {offsets = [0, 0], sizes = [64, 1], strides = [1, 1]} : vector<128x128xf32> to vector<64x1xf32>
    %9 = arith.truncf %8 : vector<64x1xf32> to vector<64x1xbf16>
    %10 = vector.broadcast %9 : vector<64x1xbf16> to vector<64x16xbf16>
    %11 = arith.mulf %10, %4 : vector<64x16xbf16>
    %cst_12 = arith.constant dense<0.000000e+00> : vector<4x16xf32>
    %12 = tpu.matmul %5, %11, %cst_12 {dimension_numbers = #tpu.dot_dimension_numbers<[1], [0], [0], [1], [0, 0, 1, 1], [], []>} : vector<4x64xbf16>, vector<64x16xbf16>, vector<4x16xf32> -> vector<4x16xf32>
    %13 = arith.truncf %12 : vector<4x16xf32> to vector<4x16xbf16>
    %cst_13 = arith.constant dense<0.000000e+00> : vector<32x16xf32>
    %14 = tpu.matmul %6, %13, %cst_13 {dimension_numbers = #tpu.dot_dimension_numbers<[1], [0], [0], [1], [0, 0, 1, 1], [], []>} : vector<32x4xbf16>, vector<4x16xbf16>, vector<32x16xf32> -> vector<32x16xf32>
    %15 = arith.truncf %14 : vector<32x16xf32> to vector<32x16xbf16>
    %cst_14 = arith.constant dense<0.000000e+00> : vector<32x128xf32>
    %16 = tpu.matmul %15, %7, %cst_14 {dimension_numbers = #tpu.dot_dimension_numbers<[1], [0], [0], [1], [0, 0, 1, 1], [], []>} : vector<32x16xbf16>, vector<16x128xbf16>, vector<32x128xf32> -> vector<32x128xf32>
    %17 = vector.shape_cast %16 : vector<32x128xf32> to vector<1x32x128xf32>
    %cst_15 = arith.constant dense<0xFF800000> : vector<1xf32>
    %18 = vector.multi_reduction <maximumf>, %17, %cst_15 [1, 2] : vector<1x32x128xf32> to vector<1xf32>
    %19 = vector.shape_cast %18 : vector<1xf32> to vector<1x1x1xf32>
    %20 = vector.extract %19[0, 0, 0] : f32 from vector<1x1x1xf32>
    %21 = vector.broadcast %20 : f32 to vector<32x128xf32>
    %22 = arith.subf %16, %21 : vector<32x128xf32>
    %23 = math.exp %22 : vector<32x128xf32>
    %cst_16 = arith.constant dense<0.000000e+00> : vector<32xf32>
    %24 = vector.multi_reduction <add>, %23, %cst_16 [1] : vector<32x128xf32> to vector<32xf32>
    %25 = vector.shape_cast %24 : vector<32xf32> to vector<32x1xf32>
    %cst_17 = arith.constant dense<0.000000e+00> : vector<1xf32>
    %26 = vector.multi_reduction <add>, %25, %cst_17 [0] : vector<32x1xf32> to vector<1xf32>
    %27 = vector.shape_cast %26 : vector<1xf32> to vector<1x1xf32>
    %28 = tpu.reciprocal %27 : vector<1x1xf32> -> vector<1x1xf32>
    %29 = vector.broadcast %28 : vector<1x1xf32> to vector<32x128xf32>
    %30 = arith.mulf %23, %29 : vector<32x128xf32>
    %c0_18 = arith.constant 0 : index
    %c0_19 = arith.constant 0 : index
    %c0_20 = arith.constant 0 : index
    %31 = vector.load %arg7[%c0_18, %c0_19, %c0_20] : memref<2x32x128xf32, #tpu.memory_space<vmem>>, vector<1x32x128xf32>
    %32 = vector.shape_cast %31 : vector<1x32x128xf32> to vector<32x128xf32>
    %33 = vector.shape_cast %30 : vector<32x128xf32> to vector<1x32x128xf32>
    tpu.vector_store %arg7[%c0_18, %c0_19, %c0_20], %33 {strides = array<i32>} : memref<2x32x128xf32, #tpu.memory_space<vmem>>, vector<1x32x128xf32>,
    %34 = vector.extract_strided_slice %3 {offsets = [64, 0], sizes = [64, 1], strides = [1, 1]} : vector<128x128xf32> to vector<64x1xf32>
    %35 = arith.truncf %34 : vector<64x1xf32> to vector<64x1xbf16>
    %36 = vector.broadcast %35 : vector<64x1xbf16> to vector<64x16xbf16>
    %37 = arith.mulf %36, %4 : vector<64x16xbf16>
    %cst_21 = arith.constant dense<0.000000e+00> : vector<4x16xf32>
    %38 = tpu.matmul %5, %37, %cst_21 {dimension_numbers = #tpu.dot_dimension_numbers<[1], [0], [0], [1], [0, 0, 1, 1], [], []>} : vector<4x64xbf16>, vector<64x16xbf16>, vector<4x16xf32> -> vector<4x16xf32>
    %39 = arith.truncf %38 : vector<4x16xf32> to vector<4x16xbf16>
    %cst_22 = arith.constant dense<0.000000e+00> : vector<32x16xf32>
    %40 = tpu.matmul %6, %39, %cst_22 {dimension_numbers = #tpu.dot_dimension_numbers<[1], [0], [0], [1], [0, 0, 1, 1], [], []>} : vector<32x4xbf16>, vector<4x16xbf16>, vector<32x16xf32> -> vector<32x16xf32>
    %41 = arith.truncf %40 : vector<32x16xf32> to vector<32x16xbf16>
    %cst_23 = arith.constant dense<0.000000e+00> : vector<32x128xf32>
    %42 = tpu.matmul %41, %7, %cst_23 {dimension_numbers = #tpu.dot_dimension_numbers<[1], [0], [0], [1], [0, 0, 1, 1], [], []>} : vector<32x16xbf16>, vector<16x128xbf16>, vector<32x128xf32> -> vector<32x128xf32>
    %43 = vector.shape_cast %42 : vector<32x128xf32> to vector<1x32x128xf32>
    %cst_24 = arith.constant dense<0xFF800000> : vector<1xf32>
    %44 = vector.multi_reduction <maximumf>, %43, %cst_24 [1, 2] : vector<1x32x128xf32> to vector<1xf32>
    %45 = vector.shape_cast %44 : vector<1xf32> to vector<1x1x1xf32>
    %46 = vector.extract %45[0, 0, 0] : f32 from vector<1x1x1xf32>
    %47 = vector.broadcast %46 : f32 to vector<32x128xf32>
    %48 = arith.subf %42, %47 : vector<32x128xf32>
    %49 = math.exp %48 : vector<32x128xf32>
    %cst_25 = arith.constant dense<0.000000e+00> : vector<32xf32>
    %50 = vector.multi_reduction <add>, %49, %cst_25 [1] : vector<32x128xf32> to vector<32xf32>
    %51 = vector.shape_cast %50 : vector<32xf32> to vector<32x1xf32>
    %cst_26 = arith.constant dense<0.000000e+00> : vector<1xf32>
    %52 = vector.multi_reduction <add>, %51, %cst_26 [0] : vector<32x1xf32> to vector<1xf32>
    %53 = vector.shape_cast %52 : vector<1xf32> to vector<1x1xf32>
    %54 = tpu.reciprocal %53 : vector<1x1xf32> -> vector<1x1xf32>
    %55 = vector.broadcast %54 : vector<1x1xf32> to vector<32x128xf32>
    %56 = arith.mulf %49, %55 : vector<32x128xf32>
    %c1 = arith.constant 1 : index
    %c0_27 = arith.constant 0 : index
    %c0_28 = arith.constant 0 : index
    %57 = vector.load %arg7[%c1, %c0_27, %c0_28] : memref<2x32x128xf32, #tpu.memory_space<vmem>>, vector<1x32x128xf32>
    %58 = vector.shape_cast %57 : vector<1x32x128xf32> to vector<32x128xf32>
    %59 = vector.shape_cast %56 : vector<32x128xf32> to vector<1x32x128xf32>
    tpu.vector_store %arg7[%c1, %c0_27, %c0_28], %59 {strides = array<i32>} : memref<2x32x128xf32, #tpu.memory_space<vmem>>, vector<1x32x128xf32>,
    return
  }
  func.func @transform_0(%arg0: i32) -> (i32, i32, i32) {
    %c0_i32 = arith.constant 0 : i32
    %c0_i32_0 = arith.constant 0 : i32
    %c0_i32_1 = arith.constant 0 : i32
    return %arg0, %c0_i32, %c0_i32_0 : i32, i32, i32
  }
  func.func @transform_1(%arg0: i32) -> (i32, i32) {
    %c0_i32 = arith.constant 0 : i32
    %c0_i32_0 = arith.constant 0 : i32
    %c0_i32_1 = arith.constant 0 : i32
    return %c0_i32, %c0_i32_0 : i32, i32
  }
  func.func @transform_2(%arg0: i32) -> (i32, i32) {
    %c0_i32 = arith.constant 0 : i32
    %c0_i32_0 = arith.constant 0 : i32
    %c0_i32_1 = arith.constant 0 : i32
    return %c0_i32, %c0_i32_0 : i32, i32
  }
  func.func @transform_3(%arg0: i32) -> (i32, i32) {
    %c0_i32 = arith.constant 0 : i32
    %c0_i32_0 = arith.constant 0 : i32
    %c0_i32_1 = arith.constant 0 : i32
    return %c0_i32, %c0_i32_0 : i32, i32
  }
  func.func @transform_4(%arg0: i32) -> (i32, i32) {
    %c0_i32 = arith.constant 0 : i32
    %c0_i32_0 = arith.constant 0 : i32
    %c0_i32_1 = arith.constant 0 : i32
    return %c0_i32, %c0_i32_0 : i32, i32
  }
  func.func @transform_5(%arg0: i32) -> (i32, i32) {
    %c0_i32 = arith.constant 0 : i32
    %c0_i32_0 = arith.constant 0 : i32
    %c0_i32_1 = arith.constant 0 : i32
    return %c0_i32, %c0_i32_0 : i32, i32
  }
  func.func @transform_6(%arg0: i32) -> (i32, i32, i32) {
    %c0_i32 = arith.constant 0 : i32
    %c0_i32_0 = arith.constant 0 : i32
    %c0_i32_1 = arith.constant 0 : i32
    return %arg0, %c0_i32, %c0_i32_0 : i32, i32, i32
  }
}

</mosaic_0001>

<llo_original>
// kernel: tpu_custom_call.1
$region0: #{tpu_custom_call.1}
  #allocation0 [shape = 'u32[]', space=smem, size = 0x4, offset = 0x4, fixed_abs, tag = 'smem constant byte address 0x4 - core index']
  #allocation1 [shape = 'u32[144,128]{1,0:T(1,128)}', space=vmem, size = 0x12000, scoped, tag = 'internal scratch']
  %s0 = inlined_call_operand.hbm [shape: bf16[4,128,512], index: 0, kind: input, shape index: {}]
  %s1 = inlined_call_operand.hbm [shape: bf16[512,128], index: 1, kind: input, shape index: {}]
  %s2 = inlined_call_operand.vmem [shape: bf16[64,16], index: 2, kind: input, shape index: {}]
  %s3 = inlined_call_operand.vmem [shape: bf16[4,64], index: 3, kind: input, shape index: {}]
  %s4 = inlined_call_operand.vmem [shape: bf16[32,4], index: 4, kind: input, shape index: {}]
  %s5 = inlined_call_operand.vmem [shape: bf16[16,128], index: 5, kind: input, shape index: {}]
  %s6 = inlined_call_operand.hbm [shape: f32[8,32,128], index: 6, kind: output, shape index: {}]
  %s7 = sld [smem:[#allocation0]]
  $region65: #{tpu_custom_call.1} parent=0
    _
  %s9 = ssub.s32 1, %s7
  %s10 = scalar_select 0, %s9, %s7
  $region1: #{tpu_custom_call.1} parent=0
    #allocation2 [shape = 'u8[262144]{0}', space=vmem, size = 0x40000, scoped, tag = 'input window, operand 0']
    #allocation3 [shape = 's32[2]{0}', space=sflag, size = 0x8, scoped, tag = 'scoped memory for tpu_custom_call.1']
    #allocation4 [shape = 's32[2]{0}', space=sflag, size = 0x8, scoped, tag = 'scoped memory for tpu_custom_call.1']
    #allocation5 [shape = 'u8[131072]{0}', space=vmem, size = 0x20000, scoped, tag = 'input window, operand 1, single buffered']
    #allocation6 [shape = 's32[1]{0}', space=sflag, size = 0x4, scoped, tag = 'scoped memory for tpu_custom_call.1']
    #allocation7 [shape = 'u8[65536]{0}', space=vmem, size = 0x10000, scoped, tag = 'output window, operand 0']
    %11 = vsyncpa [#allocation3], 0
    %s12 = scalar_lea.sflag [#allocation3], 1
    %13 = vsyncpa %s12, 0
    %14 = vsyncpa [#allocation6], 0
    %15 = vsyncpa [#allocation4], 0
    %s16 = scalar_lea.sflag [#allocation4], 1
    %17 = vsyncpa %s16, 0
    loop: start=0, step=1, limit=6
    $region2: #{tpu_custom_call.1} parent=1 // loop_pre_header
      _
    $region3: #{tpu_custom_call.1} parent=1 // loop_header
      %s19 = sphi 0, %s23
      %p20 = scmp.ge.s32.totalorder %s19, 6
      %s29 = sphi 0, %s31
      %s32 = sphi 0, %s29
      %s33 = sphi 0, %s32
      %s49 = sphi 0, %s33
      %s53 = sphi 0, %s53
      %s55 = sphi 0, %s53
      %s56 = sphi 0, %s55
      %s70 = sphi 0, %s56
      %s74 = sphi 0, %s74
      %s76 = sphi 0, %s74
      %s77 = sphi 0, %s76
      %s91 = sphi 0, %s77
      %s95 = sphi 0, %s95
      %s97 = sphi 0, %s95
      %s98 = sphi 0, %s97
      %s112 = sphi 0, %s98
      %s116 = sphi 0, %s116
      %s118 = sphi 0, %s116
      %s119 = sphi 0, %s118
      %s133 = sphi 0, %s119
      %s137 = sphi 0, %s137
      %s139 = sphi 0, %s137
      %s140 = sphi 0, %s139
      %s154 = sphi 0, %s140
      %s160 = sphi 0, %s162
      %s163 = sphi 0, %s160
      %s164 = sphi 0, %s163
      %s180 = sphi 0, %s164
    $region4: #{tpu_custom_call.1} parent=1 // loop_header_branch
      %22 = sbr.rel (%p20) target = $region8
    $region5: #{tpu_custom_call.1} parent=1 // loop_body
      %s24 = ssub.s32 %s19, 1
      %s25 = ssub.s32 %s19, 2
      %s26 = sadd.s32 %s19, 1
      %s27 = ssub.s32 %s19, %s26
      %p28 = scmp.eq.s32.totalorder %s27, 0
      %s30 = sadd.s32 %s29, 1
      %s31 = scalar_select %p28, %s29, %s30
      %p34 = pneg %p28
      %p35 = scmp.eq.s32.totalorder %s19, 3
      %p36 = por %p34, %p35
      %p37 = scmp.ne.s32.totalorder %s29, %s32
      %p38 = scmp.eq.s32.totalorder %s19, 0
      %p39 = por %p37, %p38
      %p40 = scmp.ne.s32.totalorder %s29, %s32
      %p41 = scmp.eq.s32.totalorder %s24, 3
      %p42 = por %p40, %p41
      %p43 = scmp.ne.s32.totalorder %s32, %s33
      %p44 = scmp.eq.s32.totalorder %s24, 0
      %p45 = por %p43, %p44
      %p46 = scmp.ne.s32.totalorder %s32, %s33
      %p47 = scmp.eq.s32.totalorder %s25, 3
      %p48 = por %p46, %p47
      %p50 = scmp.ne.s32.totalorder %s33, %s49
      %p51 = scmp.eq.s32.totalorder %s25, 0
      %p52 = por %p50, %p51
      %s54 = sadd.s32 %s53, 1
      %p57 = scmp.eq.s32.totalorder %s19, 3
      %p58 = scmp.ne.s32.totalorder %s53, %s55
      %p59 = scmp.eq.s32.totalorder %s19, 0
      %p60 = por %p58, %p59
      %p61 = scmp.ne.s32.totalorder %s53, %s55
      %p62 = scmp.eq.s32.totalorder %s24, 3
      %p63 = por %p61, %p62
      %p64 = scmp.ne.s32.totalorder %s55, %s56
      %p65 = scmp.eq.s32.totalorder %s24, 0
      %p66 = por %p64, %p65
      %p67 = scmp.ne.s32.totalorder %s55, %s56
      %p68 = scmp.eq.s32.totalorder %s25, 3
      %p69 = por %p67, %p68
      %p71 = scmp.ne.s32.totalorder %s56, %s70
      %p72 = scmp.eq.s32.totalorder %s25, 0
      %p73 = por %p71, %p72
      %s75 = sadd.s32 %s74, 1
      %p78 = scmp.eq.s32.totalorder %s19, 3
      %p79 = scmp.ne.s32.totalorder %s74, %s76
      %p80 = scmp.eq.s32.totalorder %s19, 0
      %p81 = por %p79, %p80
      %p82 = scmp.ne.s32.totalorder %s74, %s76
      %p83 = scmp.eq.s32.totalorder %s24, 3
      %p84 = por %p82, %p83
      %p85 = scmp.ne.s32.totalorder %s76, %s77
      %p86 = scmp.eq.s32.totalorder %s24, 0
      %p87 = por %p85, %p86
      %p88 = scmp.ne.s32.totalorder %s76, %s77
      %p89 = scmp.eq.s32.totalorder %s25, 3
      %p90 = por %p88, %p89
      %p92 = scmp.ne.s32.totalorder %s77, %s91
      %p93 = scmp.eq.s32.totalorder %s25, 0
      %p94 = por %p92, %p93
      %s96 = sadd.s32 %s95, 1
      %p99 = scmp.eq.s32.totalorder %s19, 3
      %p100 = scmp.ne.s32.totalorder %s95, %s97
      %p101 = scmp.eq.s32.totalorder %s19, 0
      %p102 = por %p100, %p101
      %p103 = scmp.ne.s32.totalorder %s95, %s97
      %p104 = scmp.eq.s32.totalorder %s24, 3
      %p105 = por %p103, %p104
      %p106 = scmp.ne.s32.totalorder %s97, %s98
      %p107 = scmp.eq.s32.totalorder %s24, 0
      %p108 = por %p106, %p107
      %p109 = scmp.ne.s32.totalorder %s97, %s98
      %p110 = scmp.eq.s32.totalorder %s25, 3
      %p111 = por %p109, %p110
      %p113 = scmp.ne.s32.totalorder %s98, %s112
      %p114 = scmp.eq.s32.totalorder %s25, 0
      %p115 = por %p113, %p114
      %s117 = sadd.s32 %s116, 1
      %p120 = scmp.eq.s32.totalorder %s19, 3
      %p121 = scmp.ne.s32.totalorder %s116, %s118
      %p122 = scmp.eq.s32.totalorder %s19, 0
      %p123 = por %p121, %p122
      %p124 = scmp.ne.s32.totalorder %s116, %s118
      %p125 = scmp.eq.s32.totalorder %s24, 3
      %p126 = por %p124, %p125
      %p127 = scmp.ne.s32.totalorder %s118, %s119
      %p128 = scmp.eq.s32.totalorder %s24, 0
      %p129 = por %p127, %p128
      %p130 = scmp.ne.s32.totalorder %s118, %s119
      %p131 = scmp.eq.s32.totalorder %s25, 3
      %p132 = por %p130, %p131
      %p134 = scmp.ne.s32.totalorder %s119, %s133
      %p135 = scmp.eq.s32.totalorder %s25, 0
      %p136 = por %p134, %p135
      %s138 = sadd.s32 %s137, 1
      %p141 = scmp.eq.s32.totalorder %s19, 3
      %p142 = scmp.ne.s32.totalorder %s137, %s139
      %p143 = scmp.eq.s32.totalorder %s19, 0
      %p144 = por %p142, %p143
      %p145 = scmp.ne.s32.totalorder %s137, %s139
      %p146 = scmp.eq.s32.totalorder %s24, 3
      %p147 = por %p145, %p146
      %p148 = scmp.ne.s32.totalorder %s139, %s140
      %p149 = scmp.eq.s32.totalorder %s24, 0
      %p150 = por %p148, %p149
      %p151 = scmp.ne.s32.totalorder %s139, %s140
      %p152 = scmp.eq.s32.totalorder %s25, 3
      %p153 = por %p151, %p152
      %p155 = scmp.ne.s32.totalorder %s140, %s154
      %p156 = scmp.eq.s32.totalorder %s25, 0
      %p157 = por %p155, %p156
      %s158 = ssub.s32 %s19, %s26
      %p159 = scmp.eq.s32.totalorder %s158, 0
      %s161 = sadd.s32 %s160, 1
      %s162 = scalar_select %p159, %s160, %s161
      %p165 = pneg %p159
      %p166 = scmp.eq.s32.totalorder %s19, 3
      %p167 = por %p165, %p166
      %p168 = scmp.ne.s32.totalorder %s160, %s163
      %p169 = scmp.eq.s32.totalorder %s19, 0
      %p170 = por %p168, %p169
      %p171 = scmp.ne.s32.totalorder %s160, %s163
      %p172 = scmp.eq.s32.totalorder %s24, 3
      %p173 = por %p171, %p172
      %p174 = scmp.ne.s32.totalorder %s163, %s164
      %p175 = scmp.eq.s32.totalorder %s24, 0
      %p176 = por %p174, %p175
      %p177 = scmp.ne.s32.totalorder %s163, %s164
      %p178 = scmp.eq.s32.totalorder %s25, 3
      %p179 = por %p177, %p178
      %p181 = scmp.ne.s32.totalorder %s164, %s180
      %p182 = scmp.eq.s32.totalorder %s25, 0
      %p183 = por %p181, %p182
      %p184 = scmp.le.s32.totalorder 1, %s19
      %p185 = scmp.lt.s32.totalorder %s19, 5
      %p186 = pnand %p184, %p185
      %p187 = pneg %p186
      // Predicated region
      $region9: #{tpu_custom_call.1} parent=5 // pred_check
        _
      $region10: #{tpu_custom_call.1} parent=5 // pred_check_branch
        %189 = sbr.rel (%p186) target = $region12
      $region11: #{tpu_custom_call.1} parent=5 // pred_region
        %s190 = ssub.s32 %s19, 1
        // Predicated region
        $region13: #{tpu_custom_call.1} parent=11 // pred_check
          %p191 = pneg %p66
        $region14: #{tpu_custom_call.1} parent=11 // pred_check_branch
          %193 = sbr.rel (%p191) target = $region16
        $region15: #{tpu_custom_call.1} parent=11 // pred_region
          %s195 = ssub.s32 4096, 4096
          %196 = vsyncadd [#allocation6], %s195
          %s197 = sshll.u32 [#allocation5], 4
          %s198 = int_to_ptr.vmem [resolvable:$true] %s197
          %203 = dma.hbm_to_vmem [thread:$0]  %s1, 4096, %s198, [#allocation6], 64, 64, 4
        $region16: #{tpu_custom_call.1} parent=11 // pred_fallthru
          _
        // Predicated region
        $region17: #{tpu_custom_call.1} parent=11 // pred_check
          %p204 = pneg %p87
        $region18: #{tpu_custom_call.1} parent=11 // pred_check_branch
          %206 = sbr.rel (%p204) target = $region20
        $region19: #{tpu_custom_call.1} parent=11 // pred_region
          _
        $region20: #{tpu_custom_call.1} parent=11 // pred_fallthru
          _
        // Predicated region
        $region21: #{tpu_custom_call.1} parent=11 // pred_check
          %p207 = pneg %p108
        $region22: #{tpu_custom_call.1} parent=11 // pred_check_branch
          %209 = sbr.rel (%p207) target = $region24
        $region23: #{tpu_custom_call.1} parent=11 // pred_region
          _
        $region24: #{tpu_custom_call.1} parent=11 // pred_fallthru
          _
        // Predicated region
        $region25: #{tpu_custom_call.1} parent=11 // pred_check
          %p210 = pneg %p129
        $region26: #{tpu_custom_call.1} parent=11 // pred_check_branch
          %212 = sbr.rel (%p210) target = $region28
        $region27: #{tpu_custom_call.1} parent=11 // pred_region
          _
        $region28: #{tpu_custom_call.1} parent=11 // pred_fallthru
          _
        // Predicated region
        $region29: #{tpu_custom_call.1} parent=11 // pred_check
          %p213 = pneg %p150
        $region30: #{tpu_custom_call.1} parent=11 // pred_check_branch
          %215 = sbr.rel (%p213) target = $region32
        $region31: #{tpu_custom_call.1} parent=11 // pred_region
          _
        $region32: #{tpu_custom_call.1} parent=11 // pred_fallthru
          _
      $region12: #{tpu_custom_call.1} parent=5 // pred_fallthru
        _
      %p216 = scmp.lt.s32.totalorder %s19, 4
      // Predicated region
      $region33: #{tpu_custom_call.1} parent=5 // pred_check
        %p217 = pneg %p216
      $region34: #{tpu_custom_call.1} parent=5 // pred_check_branch
        %219 = sbr.rel (%p217) target = $region36
      $region35: #{tpu_custom_call.1} parent=5 // pred_region
        // Predicated region
        $region37: #{tpu_custom_call.1} parent=35 // pred_check
          %p220 = pneg %p39
        $region38: #{tpu_custom_call.1} parent=35 // pred_check_branch
          %222 = sbr.rel (%p220) target = $region40
        $region39: #{tpu_custom_call.1} parent=35 // pred_region
          %s223 = sand.u32 %s29, 1
          %s224 = scalar_lea.sflag [#allocation3], %s223
          %s225 = sand.u32 %s29, 1
          %s226 = smul.addr %s225, 256
          %s227 = scalar_lea.vmem [#allocation2], %s226
          %s229 = ssub.s32 4096, 4096
          %230 = vsyncadd %s224, %s229
          %s231 = smul.addr %s19, 64
          %s232 = smul.addr %s231, 64
          %s233 = scalar_lea.hbm %s0, %s232
          %s234 = sshll.u32 %s227, 4
          %s235 = int_to_ptr.vmem [resolvable:$true] %s234
          %240 = dma.hbm_to_vmem [thread:$0]  %s233, 4096, %s235, %s224, 256, 256, 16
        $region40: #{tpu_custom_call.1} parent=35 // pred_fallthru
          _
      $region36: #{tpu_custom_call.1} parent=5 // pred_fallthru
        _
      %p241 = scmp.le.s32.totalorder 1, %s19
      %p242 = scmp.lt.s32.totalorder %s19, 5
      %p243 = pnand %p241, %p242
      %p244 = pneg %p243
      // Predicated region
      $region41: #{tpu_custom_call.1} parent=5 // pred_check
        _
      $region42: #{tpu_custom_call.1} parent=5 // pred_check_branch
        %246 = sbr.rel (%p243) target = $region44
      $region43: #{tpu_custom_call.1} parent=5 // pred_region
        %s247 = ssub.s32 %s19, 1
        %s248 = sand.u32 %s32, 1
        %s249 = scalar_lea.sflag [#allocation3], %s248
        %s250 = sand.u32 %s32, 1
        %s251 = smul.addr %s250, 256
        %s252 = scalar_lea.vmem [#allocation2], %s251
        // Predicated region
        $region45: #{tpu_custom_call.1} parent=43 // pred_check
          %p253 = pneg %p45
        $region46: #{tpu_custom_call.1} parent=43 // pred_check_branch
          %255 = sbr.rel (%p253) target = $region48
        $region47: #{tpu_custom_call.1} parent=43 // pred_region
          %256 = dma.done %s249, 4096
        $region48: #{tpu_custom_call.1} parent=43 // pred_fallthru
          _
        // Predicated region
        $region49: #{tpu_custom_call.1} parent=43 // pred_check
          %p257 = pneg %p66
        $region50: #{tpu_custom_call.1} parent=43 // pred_check_branch
          %259 = sbr.rel (%p257) target = $region52
        $region51: #{tpu_custom_call.1} parent=43 // pred_region
          %260 = dma.done [#allocation6], 4096
        $region52: #{tpu_custom_call.1} parent=43 // pred_fallthru
          _
        %s261 = sand.u32 %s32, 1
        %s262 = scalar_lea.sflag [#allocation3], %s261
        %s263 = sand.u32 %s32, 1
        %s264 = smul.addr %s263, 256
        %s265 = scalar_lea.vmem [#allocation2], %s264
        %p266 = pneg %p45
        %p267 = pneg %p42
        %p268 = pneg %p66
        %p269 = pneg %p63
        %p270 = pneg %p87
        %p271 = pneg %p84
        %p272 = pneg %p108
        %p273 = pneg %p105
        %p274 = pneg %p129
        %p275 = pneg %p126
        %p276 = pneg %p150
        %p277 = pneg %p147
        %p278 = pneg %p176
        %p279 = pneg %p173
        %s280 = sand.u32 %s163, 1
        %s281 = scalar_lea.sflag [#allocation4], %s280
        %s282 = sand.u32 %s163, 1
        %s283 = smul.addr %s282, 64
        %s284 = scalar_lea.vmem [#allocation7], %s283
        %s285 = smul.u32 2, %s24
        %v287 = vld [vmem:[%s252] sm:$0xff]
        %v288 = vld [vmem:[%s252 + $0x8] sm:$0xff]
        %v289 = vld [vmem:[%s252 + $0x10] sm:$0xff]
        %v290 = vld [vmem:[%s252 + $0x18] sm:$0xff]
        %v291 = vld [vmem:[%s252 + $0x20] sm:$0xff]
        %v292 = vld [vmem:[%s252 + $0x28] sm:$0xff]
        %v293 = vld [vmem:[%s252 + $0x30] sm:$0xff]
        %v294 = vld [vmem:[%s252 + $0x38] sm:$0xff]
        %v295 = vld [vmem:[%s252 + $0x40] sm:$0xff]
        %v296 = vld [vmem:[%s252 + $0x48] sm:$0xff]
        %v297 = vld [vmem:[%s252 + $0x50] sm:$0xff]
        %v298 = vld [vmem:[%s252 + $0x58] sm:$0xff]
        %v299 = vld [vmem:[%s252 + $0x60] sm:$0xff]
        %v300 = vld [vmem:[%s252 + $0x68] sm:$0xff]
        %v301 = vld [vmem:[%s252 + $0x70] sm:$0xff]
        %v302 = vld [vmem:[%s252 + $0x78] sm:$0xff]
        %v303 = vld [vmem:[%s252 + $0x80] sm:$0xff]
        %v304 = vld [vmem:[%s252 + $0x88] sm:$0xff]
        %v305 = vld [vmem:[%s252 + $0x90] sm:$0xff]
        %v306 = vld [vmem:[%s252 + $0x98] sm:$0xff]
        %v307 = vld [vmem:[%s252 + $0xa0] sm:$0xff]
        %v308 = vld [vmem:[%s252 + $0xa8] sm:$0xff]
        %v309 = vld [vmem:[%s252 + $0xb0] sm:$0xff]
        %v310 = vld [vmem:[%s252 + $0xb8] sm:$0xff]
        %v311 = vld [vmem:[%s252 + $0xc0] sm:$0xff]
        %v312 = vld [vmem:[%s252 + $0xc8] sm:$0xff]
        %v313 = vld [vmem:[%s252 + $0xd0] sm:$0xff]
        %v314 = vld [vmem:[%s252 + $0xd8] sm:$0xff]
        %v315 = vld [vmem:[%s252 + $0xe0] sm:$0xff]
        %v316 = vld [vmem:[%s252 + $0xe8] sm:$0xff]
        %v317 = vld [vmem:[%s252 + $0xf0] sm:$0xff]
        %v318 = vld [vmem:[%s252 + $0xf8] sm:$0xff]
        %v319 = vld [vmem:[#allocation5] sm:$0xf]
        %v320 = vld [vmem:[#allocation5 + $0x4] sm:$0xf]
        %v321 = vld [vmem:[#allocation5 + $0x8] sm:$0xf]
        %v322 = vld [vmem:[#allocation5 + $0xc] sm:$0xf]
        %v323 = vld [vmem:[#allocation5 + $0x10] sm:$0xf]
        %v324 = vld [vmem:[#allocation5 + $0x14] sm:$0xf]
        %v325 = vld [vmem:[#allocation5 + $0x18] sm:$0xf]
        %v326 = vld [vmem:[#allocation5 + $0x1c] sm:$0xf]
        %v327 = vld [vmem:[#allocation5 + $0x20] sm:$0xf]
        %v328 = vld [vmem:[#allocation5 + $0x24] sm:$0xf]
        %v329 = vld [vmem:[#allocation5 + $0x28] sm:$0xf]
        %v330 = vld [vmem:[#allocation5 + $0x2c] sm:$0xf]
        %v331 = vld [vmem:[#allocation5 + $0x30] sm:$0xf]
        %v332 = vld [vmem:[#allocation5 + $0x34] sm:$0xf]
        %v333 = vld [vmem:[#allocation5 + $0x38] sm:$0xf]
        %v334 = vld [vmem:[#allocation5 + $0x3c] sm:$0xf]
        %v335 = vld [vmem:[#allocation5 + $0x40] sm:$0xf]
        %v336 = vld [vmem:[#allocation5 + $0x44] sm:$0xf]
        %v337 = vld [vmem:[#allocation5 + $0x48] sm:$0xf]
        %v338 = vld [vmem:[#allocation5 + $0x4c] sm:$0xf]
        %v339 = vld [vmem:[#allocation5 + $0x50] sm:$0xf]
        %v340 = vld [vmem:[#allocation5 + $0x54] sm:$0xf]
        %v341 = vld [vmem:[#allocation5 + $0x58] sm:$0xf]
        %v342 = vld [vmem:[#allocation5 + $0x5c] sm:$0xf]
        %v343 = vld [vmem:[#allocation5 + $0x60] sm:$0xf]
        %v344 = vld [vmem:[#allocation5 + $0x64] sm:$0xf]
        %v345 = vld [vmem:[#allocation5 + $0x68] sm:$0xf]
        %v346 = vld [vmem:[#allocation5 + $0x6c] sm:$0xf]
        %v347 = vld [vmem:[#allocation5 + $0x70] sm:$0xf]
        %v348 = vld [vmem:[#allocation5 + $0x74] sm:$0xf]
        %v349 = vld [vmem:[#allocation5 + $0x78] sm:$0xf]
        %v350 = vld [vmem:[#allocation5 + $0x7c] sm:$0xf]
        %v351 = vld [vmem:[#allocation5 + $0x80] sm:$0xf]
        %v352 = vld [vmem:[#allocation5 + $0x84] sm:$0xf]
        %v353 = vld [vmem:[#allocation5 + $0x88] sm:$0xf]
        %v354 = vld [vmem:[#allocation5 + $0x8c] sm:$0xf]
        %v355 = vld [vmem:[#allocation5 + $0x90] sm:$0xf]
        %v356 = vld [vmem:[#allocation5 + $0x94] sm:$0xf]
        %v357 = vld [vmem:[#allocation5 + $0x98] sm:$0xf]
        %v358 = vld [vmem:[#allocation5 + $0x9c] sm:$0xf]
        %v359 = vld [vmem:[#allocation5 + $0xa0] sm:$0xf]
        %v360 = vld [vmem:[#allocation5 + $0xa4] sm:$0xf]
        %v361 = vld [vmem:[#allocation5 + $0xa8] sm:$0xf]
        %v362 = vld [vmem:[#allocation5 + $0xac] sm:$0xf]
        %v363 = vld [vmem:[#allocation5 + $0xb0] sm:$0xf]
        %v364 = vld [vmem:[#allocation5 + $0xb4] sm:$0xf]
        %v365 = vld [vmem:[#allocation5 + $0xb8] sm:$0xf]
        %v366 = vld [vmem:[#allocation5 + $0xbc] sm:$0xf]
        %v367 = vld [vmem:[#allocation5 + $0xc0] sm:$0xf]
        %v368 = vld [vmem:[#allocation5 + $0xc4] sm:$0xf]
        %v369 = vld [vmem:[#allocation5 + $0xc8] sm:$0xf]
        %v370 = vld [vmem:[#allocation5 + $0xcc] sm:$0xf]
        %v371 = vld [vmem:[#allocation5 + $0xd0] sm:$0xf]
        %v372 = vld [vmem:[#allocation5 + $0xd4] sm:$0xf]
        %v373 = vld [vmem:[#allocation5 + $0xd8] sm:$0xf]
        %v374 = vld [vmem:[#allocation5 + $0xdc] sm:$0xf]
        %v375 = vld [vmem:[#allocation5 + $0xe0] sm:$0xf]
        %v376 = vld [vmem:[#allocation5 + $0xe4] sm:$0xf]
        %v377 = vld [vmem:[#allocation5 + $0xe8] sm:$0xf]
        %v378 = vld [vmem:[#allocation5 + $0xec] sm:$0xf]
        %v379 = vld [vmem:[#allocation5 + $0xf0] sm:$0xf]
        %v380 = vld [vmem:[#allocation5 + $0xf4] sm:$0xf]
        %v381 = vld [vmem:[#allocation5 + $0xf8] sm:$0xf]
        %v382 = vld [vmem:[#allocation5 + $0xfc] sm:$0xf]
        %v415 = vunpack.c.l.b16 %v287
        %v416 = vunpack.c.h.b16 %v287
        %v417 = vunpack.c.l.b16 %v288
        %v418 = vunpack.c.h.b16 %v288
        %v419 = vunpack.c.l.b16 %v289
        %v420 = vunpack.c.h.b16 %v289
        %v421 = vunpack.c.l.b16 %v290
        %v422 = vunpack.c.h.b16 %v290
        %v423 = vunpack.c.l.b16 %v291
        %v424 = vunpack.c.h.b16 %v291
        %v425 = vunpack.c.l.b16 %v292
        %v426 = vunpack.c.h.b16 %v292
        %v427 = vunpack.c.l.b16 %v293
        %v428 = vunpack.c.h.b16 %v293
        %v429 = vunpack.c.l.b16 %v294
        %v430 = vunpack.c.h.b16 %v294
        %v431 = vunpack.c.l.b16 %v295
        %v432 = vunpack.c.h.b16 %v295
        %v433 = vunpack.c.l.b16 %v296
        %v434 = vunpack.c.h.b16 %v296
        %v435 = vunpack.c.l.b16 %v297
        %v436 = vunpack.c.h.b16 %v297
        %v437 = vunpack.c.l.b16 %v298
        %v438 = vunpack.c.h.b16 %v298
        %v439 = vunpack.c.l.b16 %v299
        %v440 = vunpack.c.h.b16 %v299
        %v441 = vunpack.c.l.b16 %v300
        %v442 = vunpack.c.h.b16 %v300
        %v443 = vunpack.c.l.b16 %v301
        %v444 = vunpack.c.h.b16 %v301
        %v445 = vunpack.c.l.b16 %v302
        %v446 = vunpack.c.h.b16 %v302
        %v447 = vunpack.c.l.b16 %v303
        %v448 = vunpack.c.h.b16 %v303
        %v449 = vunpack.c.l.b16 %v304
        %v450 = vunpack.c.h.b16 %v304
        %v451 = vunpack.c.l.b16 %v305
        %v452 = vunpack.c.h.b16 %v305
        %v453 = vunpack.c.l.b16 %v306
        %v454 = vunpack.c.h.b16 %v306
        %v455 = vunpack.c.l.b16 %v307
        %v456 = vunpack.c.h.b16 %v307
        %v457 = vunpack.c.l.b16 %v308
        %v458 = vunpack.c.h.b16 %v308
        %v459 = vunpack.c.l.b16 %v309
        %v460 = vunpack.c.h.b16 %v309
        %v461 = vunpack.c.l.b16 %v310
        %v462 = vunpack.c.h.b16 %v310
        %v463 = vunpack.c.l.b16 %v311
        %v464 = vunpack.c.h.b16 %v311
        %v465 = vunpack.c.l.b16 %v312
        %v466 = vunpack.c.h.b16 %v312
        %v467 = vunpack.c.l.b16 %v313
        %v468 = vunpack.c.h.b16 %v313
        %v469 = vunpack.c.l.b16 %v314
        %v470 = vunpack.c.h.b16 %v314
        %v471 = vunpack.c.l.b16 %v315
        %v472 = vunpack.c.h.b16 %v315
        %v473 = vunpack.c.l.b16 %v316
        %v474 = vunpack.c.h.b16 %v316
        %v475 = vunpack.c.l.b16 %v317
        %v476 = vunpack.c.h.b16 %v317
        %v477 = vunpack.c.l.b16 %v318
        %v478 = vunpack.c.h.b16 %v318
        %v479 = vpack.c.b16 %v419, %v415
        %v480 = vpack.c.b16 %v420, %v416
        %v481 = vpack.c.b16 %v421, %v417
        %v482 = vpack.c.b16 %v422, %v418
        %v483 = vpack.c.b16 %v427, %v423
        %v484 = vpack.c.b16 %v428, %v424
        %v485 = vpack.c.b16 %v429, %v425
        %v486 = vpack.c.b16 %v430, %v426
        %v487 = vpack.c.b16 %v435, %v431
        %v488 = vpack.c.b16 %v436, %v432
        %v489 = vpack.c.b16 %v437, %v433
        %v490 = vpack.c.b16 %v438, %v434
        %v491 = vpack.c.b16 %v443, %v439
        %v492 = vpack.c.b16 %v444, %v440
        %v493 = vpack.c.b16 %v445, %v441
        %v494 = vpack.c.b16 %v446, %v442
        %v495 = vpack.c.b16 %v451, %v447
        %v496 = vpack.c.b16 %v452, %v448
        %v497 = vpack.c.b16 %v453, %v449
        %v498 = vpack.c.b16 %v454, %v450
        %v499 = vpack.c.b16 %v459, %v455
        %v500 = vpack.c.b16 %v460, %v456
        %v501 = vpack.c.b16 %v461, %v457
        %v502 = vpack.c.b16 %v462, %v458
        %v503 = vpack.c.b16 %v467, %v463
        %v504 = vpack.c.b16 %v468, %v464
        %v505 = vpack.c.b16 %v469, %v465
        %v506 = vpack.c.b16 %v470, %v466
        %v507 = vpack.c.b16 %v475, %v471
        %v508 = vpack.c.b16 %v476, %v472
        %v509 = vpack.c.b16 %v477, %v473
        %v510 = vpack.c.b16 %v478, %v474
        %v607 = vunpack.c.l.b16 %v319
        %v608 = vunpack.c.l.b16 %v320
        %v609 = vunpack.c.l.b16 %v321
        %v610 = vunpack.c.l.b16 %v322
        %v611 = vunpack.c.l.b16 %v323
        %v612 = vunpack.c.l.b16 %v324
        %v613 = vunpack.c.l.b16 %v325
        %v614 = vunpack.c.l.b16 %v326
        %v615 = vunpack.c.l.b16 %v327
        %v616 = vunpack.c.l.b16 %v328
        %v617 = vunpack.c.l.b16 %v329
        %v618 = vunpack.c.l.b16 %v330
        %v619 = vunpack.c.l.b16 %v331
        %v620 = vunpack.c.l.b16 %v332
        %v621 = vunpack.c.l.b16 %v333
        %v622 = vunpack.c.l.b16 %v334
        %v623 = vunpack.c.l.b16 %v335
        %v624 = vunpack.c.l.b16 %v336
        %v625 = vunpack.c.l.b16 %v337
        %v626 = vunpack.c.l.b16 %v338
        %v627 = vunpack.c.l.b16 %v339
        %v628 = vunpack.c.l.b16 %v340
        %v629 = vunpack.c.l.b16 %v341
        %v630 = vunpack.c.l.b16 %v342
        %v631 = vunpack.c.l.b16 %v343
        %v632 = vunpack.c.l.b16 %v344
        %v633 = vunpack.c.l.b16 %v345
        %v634 = vunpack.c.l.b16 %v346
        %v635 = vunpack.c.l.b16 %v347
        %v636 = vunpack.c.l.b16 %v348
        %v637 = vunpack.c.l.b16 %v349
        %v638 = vunpack.c.l.b16 %v350
        %v639 = vunpack.c.l.b16 %v351
        %v640 = vunpack.c.l.b16 %v352
        %v641 = vunpack.c.l.b16 %v353
        %v642 = vunpack.c.l.b16 %v354
        %v643 = vunpack.c.l.b16 %v355
        %v644 = vunpack.c.l.b16 %v356
        %v645 = vunpack.c.l.b16 %v357
        %v646 = vunpack.c.l.b16 %v358
        %v647 = vunpack.c.l.b16 %v359
        %v648 = vunpack.c.l.b16 %v360
        %v649 = vunpack.c.l.b16 %v361
        %v650 = vunpack.c.l.b16 %v362
        %v651 = vunpack.c.l.b16 %v363
        %v652 = vunpack.c.l.b16 %v364
        %v653 = vunpack.c.l.b16 %v365
        %v654 = vunpack.c.l.b16 %v366
        %v655 = vunpack.c.l.b16 %v367
        %v656 = vunpack.c.l.b16 %v368
        %v657 = vunpack.c.l.b16 %v369
        %v658 = vunpack.c.l.b16 %v370
        %v659 = vunpack.c.l.b16 %v371
        %v660 = vunpack.c.l.b16 %v372
        %v661 = vunpack.c.l.b16 %v373
        %v662 = vunpack.c.l.b16 %v374
        %v663 = vunpack.c.l.b16 %v375
        %v664 = vunpack.c.l.b16 %v376
        %v665 = vunpack.c.l.b16 %v377
        %v666 = vunpack.c.l.b16 %v378
        %v667 = vunpack.c.l.b16 %v379
        %v668 = vunpack.c.l.b16 %v380
        %v669 = vunpack.c.l.b16 %v381
        %v670 = vunpack.c.l.b16 %v382
        %v671 = vpack.c.b16 %v608, %v607
        %v672 = vpack.c.b16 %v610, %v609
        %v673 = vpack.c.b16 %v612, %v611
        %v674 = vpack.c.b16 %v614, %v613
        %v675 = vpack.c.b16 %v616, %v615
        %v676 = vpack.c.b16 %v618, %v617
        %v677 = vpack.c.b16 %v620, %v619
        %v678 = vpack.c.b16 %v622, %v621
        %v679 = vpack.c.b16 %v624, %v623
        %v680 = vpack.c.b16 %v626, %v625
        %v681 = vpack.c.b16 %v628, %v627
        %v682 = vpack.c.b16 %v630, %v629
        %v683 = vpack.c.b16 %v632, %v631
        %v684 = vpack.c.b16 %v634, %v633
        %v685 = vpack.c.b16 %v636, %v635
        %v686 = vpack.c.b16 %v638, %v637
        %v687 = vpack.c.b16 %v640, %v639
        %v688 = vpack.c.b16 %v642, %v641
        %v689 = vpack.c.b16 %v644, %v643
        %v690 = vpack.c.b16 %v646, %v645
        %v691 = vpack.c.b16 %v648, %v647
        %v692 = vpack.c.b16 %v650, %v649
        %v693 = vpack.c.b16 %v652, %v651
        %v694 = vpack.c.b16 %v654, %v653
        %v695 = vpack.c.b16 %v656, %v655
        %v696 = vpack.c.b16 %v658, %v657
        %v697 = vpack.c.b16 %v660, %v659
        %v698 = vpack.c.b16 %v662, %v661
        %v699 = vpack.c.b16 %v664, %v663
        %v700 = vpack.c.b16 %v666, %v665
        %v701 = vpack.c.b16 %v668, %v667
        %v702 = vpack.c.b16 %v670, %v669
        %735 = vmatprep.subr.bf16.mxu0 0
        %736 = vmatpush1.bf16.msra.mxu0 %v671
        %737 = vmatprep.subr.bf16.mxu0 0
        %738 = vmatpush1.bf16.msra.mxu0 %v672
        %739 = vmatprep.subr.bf16.mxu0 0
        %740 = vmatpush1.bf16.msra.mxu0 %v673
        %741 = vmatprep.subr.bf16.mxu0 0
        %742 = vmatpush1.bf16.msra.mxu0 %v674
        %743 = vmatprep.subr.bf16.mxu0 0
        %744 = vmatpush1.bf16.msra.mxu0 %v675
        %745 = vmatprep.subr.bf16.mxu0 0
        %746 = vmatpush1.bf16.msra.mxu0 %v676
        %747 = vmatprep.subr.bf16.mxu0 0
        %748 = vmatpush1.bf16.msra.mxu0 %v677
        %749 = vmatprep.subr.bf16.mxu0 0
        %750 = vmatpush1.bf16.msra.mxu0 %v678
        %751 = vmatprep.subr.bf16.mxu0 0
        %752 = vmatpush1.bf16.msra.mxu0 %v679
        %753 = vmatprep.subr.bf16.mxu0 0
        %754 = vmatpush1.bf16.msra.mxu0 %v680
        %755 = vmatprep.subr.bf16.mxu0 0
        %756 = vmatpush1.bf16.msra.mxu0 %v681
        %757 = vmatprep.subr.bf16.mxu0 0
        %758 = vmatpush1.bf16.msra.mxu0 %v682
        %759 = vmatprep.subr.bf16.mxu0 0
        %760 = vmatpush1.bf16.msra.mxu0 %v683
        %761 = vmatprep.subr.bf16.mxu0 0
        %762 = vmatpush1.bf16.msra.mxu0 %v684
        %763 = vmatprep.subr.bf16.mxu0 0
        %764 = vmatpush1.bf16.msra.mxu0 %v685
        %765 = vmatprep.subr.bf16.mxu0 0
        %766 = vmatpush1.bf16.msra.mxu0 %v686
        %767 = vmatprep.mubr.bf16.mxu0 %v480
        %768 = vmatmul.mubr.bf16.gmra.mrb[0].mxu0 %v479
        %v769 = vpop.f32.mrb[0].mxu0
        %v770 = vadd.f32 0.0, %v769
        %v771 = vpop.f32.mrb[0].mxu0
        %v772 = vpop.f32.mrb[0].mxu0
        %v773 = vadd.f32 0.0, %v772
        %v774 = vpop.f32.mrb[0].mxu0
        %775 = vmatprep.mubr.bf16.mxu0 %v484
        %776 = vmatmul.mubr.bf16.gmra.mrb[0].mxu0 %v483
        %v777 = vpop.f32.mrb[0].mxu0
        %v778 = vadd.f32 0.0, %v777
        %v779 = vpop.f32.mrb[0].mxu0
        %v780 = vpop.f32.mrb[0].mxu0
        %v781 = vadd.f32 0.0, %v780
        %v782 = vpop.f32.mrb[0].mxu0
        %783 = vmatprep.mubr.bf16.mxu0 %v488
        %784 = vmatmul.mubr.bf16.gmra.mrb[0].mxu0 %v487
        %v785 = vpop.f32.mrb[0].mxu0
        %v786 = vadd.f32 0.0, %v785
        %v787 = vpop.f32.mrb[0].mxu0
        %v788 = vpop.f32.mrb[0].mxu0
        %v789 = vadd.f32 0.0, %v788
        %v790 = vpop.f32.mrb[0].mxu0
        %791 = vmatprep.mubr.bf16.mxu0 %v492
        %792 = vmatmul.mubr.bf16.gmra.mrb[0].mxu0 %v491
        %v793 = vpop.f32.mrb[0].mxu0
        %v794 = vadd.f32 0.0, %v793
        %v795 = vpop.f32.mrb[0].mxu0
        %v796 = vpop.f32.mrb[0].mxu0
        %v797 = vadd.f32 0.0, %v796
        %v798 = vpop.f32.mrb[0].mxu0
        %799 = vmatprep.mubr.bf16.mxu0 %v496
        %800 = vmatmul.mubr.bf16.gmra.mrb[0].mxu0 %v495
        %v801 = vpop.f32.mrb[0].mxu0
        %v802 = vadd.f32 0.0, %v801
        %v803 = vpop.f32.mrb[0].mxu0
        %v804 = vpop.f32.mrb[0].mxu0
        %v805 = vadd.f32 0.0, %v804
        %v806 = vpop.f32.mrb[0].mxu0
        %807 = vmatprep.mubr.bf16.mxu0 %v500
        %808 = vmatmul.mubr.bf16.gmra.mrb[0].mxu0 %v499
        %v809 = vpop.f32.mrb[0].mxu0
        %v810 = vadd.f32 0.0, %v809
        %v811 = vpop.f32.mrb[0].mxu0
        %v812 = vpop.f32.mrb[0].mxu0
        %v813 = vadd.f32 0.0, %v812
        %v814 = vpop.f32.mrb[0].mxu0
        %815 = vmatprep.mubr.bf16.mxu0 %v504
        %816 = vmatmul.mubr.bf16.gmra.mrb[0].mxu0 %v503
        %v817 = vpop.f32.mrb[0].mxu0
        %v818 = vadd.f32 0.0, %v817
        %v819 = vpop.f32.mrb[0].mxu0
        %v820 = vpop.f32.mrb[0].mxu0
        %v821 = vadd.f32 0.0, %v820
        %v822 = vpop.f32.mrb[0].mxu0
        %823 = vmatprep.mubr.bf16.mxu0 %v508
        %824 = vmatmul.mubr.bf16.gmra.mrb[0].mxu0 %v507
        %v825 = vpop.f32.mrb[0].mxu0
        %v826 = vadd.f32 0.0, %v825
        %v827 = vpop.f32.mrb[0].mxu0
        %v828 = vpop.f32.mrb[0].mxu0
        %v829 = vadd.f32 0.0, %v828
        %v830 = vpop.f32.mrb[0].mxu0
        %831 = vdwg.mxu0
        %832 = vmatprep.subr.bf16.mxu0 0
        %833 = vmatpush1.bf16.msra.mxu0 %v687
        %834 = vmatprep.subr.bf16.mxu0 0
        %835 = vmatpush1.bf16.msra.mxu0 %v688
        %836 = vmatprep.subr.bf16.mxu0 0
        %837 = vmatpush1.bf16.msra.mxu0 %v689
        %838 = vmatprep.subr.bf16.mxu0 0
        %839 = vmatpush1.bf16.msra.mxu0 %v690
        %840 = vmatprep.subr.bf16.mxu0 0
        %841 = vmatpush1.bf16.msra.mxu0 %v691
        %842 = vmatprep.subr.bf16.mxu0 0
        %843 = vmatpush1.bf16.msra.mxu0 %v692
        %844 = vmatprep.subr.bf16.mxu0 0
        %845 = vmatpush1.bf16.msra.mxu0 %v693
        %846 = vmatprep.subr.bf16.mxu0 0
        %847 = vmatpush1.bf16.msra.mxu0 %v694
        %848 = vmatprep.subr.bf16.mxu0 0
        %849 = vmatpush1.bf16.msra.mxu0 %v695
        %850 = vmatprep.subr.bf16.mxu0 0
        %851 = vmatpush1.bf16.msra.mxu0 %v696
        %852 = vmatprep.subr.bf16.mxu0 0
        %853 = vmatpush1.bf16.msra.mxu0 %v697
        %854 = vmatprep.subr.bf16.mxu0 0
        %855 = vmatpush1.bf16.msra.mxu0 %v698
        %856 = vmatprep.subr.bf16.mxu0 0
        %857 = vmatpush1.bf16.msra.mxu0 %v699
        %858 = vmatprep.subr.bf16.mxu0 0
        %859 = vmatpush1.bf16.msra.mxu0 %v700
        %860 = vmatprep.subr.bf16.mxu0 0
        %861 = vmatpush1.bf16.msra.mxu0 %v701
        %862 = vmatprep.subr.bf16.mxu0 0
        %863 = vmatpush1.bf16.msra.mxu0 %v702
        %864 = vmatprep.mubr.bf16.mxu0 %v482
        %865 = vmatmul.mubr.bf16.gmra.mrb[0].mxu0 %v481
        %v866 = vpop.f32.mrb[0].mxu0
        %v867 = vadd.f32 %v770, %v866
        %v868 = vpop.f32.mrb[0].mxu0
        %v869 = vpop.f32.mrb[0].mxu0
        %v870 = vadd.f32 %v773, %v869
        %v871 = vpop.f32.mrb[0].mxu0
        %872 = vmatprep.mubr.bf16.mxu0 %v486
        %873 = vmatmul.mubr.bf16.gmra.mrb[0].mxu0 %v485
        %v874 = vpop.f32.mrb[0].mxu0
        %v875 = vadd.f32 %v778, %v874
        %v876 = vpop.f32.mrb[0].mxu0
        %v877 = vpop.f32.mrb[0].mxu0
        %v878 = vadd.f32 %v781, %v877
        %v879 = vpop.f32.mrb[0].mxu0
        %880 = vmatprep.mubr.bf16.mxu0 %v490
        %881 = vmatmul.mubr.bf16.gmra.mrb[0].mxu0 %v489
        %v882 = vpop.f32.mrb[0].mxu0
        %v883 = vadd.f32 %v786, %v882
        %v884 = vpop.f32.mrb[0].mxu0
        %v885 = vpop.f32.mrb[0].mxu0
        %v886 = vadd.f32 %v789, %v885
        %v887 = vpop.f32.mrb[0].mxu0
        %888 = vmatprep.mubr.bf16.mxu0 %v494
        %889 = vmatmul.mubr.bf16.gmra.mrb[0].mxu0 %v493
        %v890 = vpop.f32.mrb[0].mxu0
        %v891 = vadd.f32 %v794, %v890
        %v892 = vpop.f32.mrb[0].mxu0
        %v893 = vpop.f32.mrb[0].mxu0
        %v894 = vadd.f32 %v797, %v893
        %v895 = vpop.f32.mrb[0].mxu0
        %896 = vmatprep.mubr.bf16.mxu0 %v498
        %897 = vmatmul.mubr.bf16.gmra.mrb[0].mxu0 %v497
        %v898 = vpop.f32.mrb[0].mxu0
        %v899 = vadd.f32 %v802, %v898
        %v900 = vpop.f32.mrb[0].mxu0
        %v901 = vpop.f32.mrb[0].mxu0
        %v902 = vadd.f32 %v805, %v901
        %v903 = vpop.f32.mrb[0].mxu0
        %904 = vmatprep.mubr.bf16.mxu0 %v502
        %905 = vmatmul.mubr.bf16.gmra.mrb[0].mxu0 %v501
        %v906 = vpop.f32.mrb[0].mxu0
        %v907 = vadd.f32 %v810, %v906
        %v908 = vpop.f32.mrb[0].mxu0
        %v909 = vpop.f32.mrb[0].mxu0
        %v910 = vadd.f32 %v813, %v909
        %v911 = vpop.f32.mrb[0].mxu0
        %912 = vmatprep.mubr.bf16.mxu0 %v506
        %913 = vmatmul.mubr.bf16.gmra.mrb[0].mxu0 %v505
        %v914 = vpop.f32.mrb[0].mxu0
        %v915 = vadd.f32 %v818, %v914
        %v916 = vpop.f32.mrb[0].mxu0
        %v917 = vpop.f32.mrb[0].mxu0
        %v918 = vadd.f32 %v821, %v917
        %v919 = vpop.f32.mrb[0].mxu0
        %920 = vmatprep.mubr.bf16.mxu0 %v510
        %921 = vmatmul.mubr.bf16.gmra.mrb[0].mxu0 %v509
        %v922 = vpop.f32.mrb[0].mxu0
        %v923 = vadd.f32 %v826, %v922
        %v924 = vpop.f32.mrb[0].mxu0
        %v925 = vpop.f32.mrb[0].mxu0
        %v926 = vadd.f32 %v829, %v925
        %v927 = vpop.f32.mrb[0].mxu0
        %928 = vdwg.mxu0
        %v929 = vld [vmem:[%s2] sm:$0xf]
        %v930 = vld [vmem:[%s2 + $0x4] sm:$0xf]
        %v931 = vld [vmem:[%s2 + $0x8] sm:$0xf]
        %v932 = vld [vmem:[%s2 + $0xc] sm:$0xf]
        %v933 = vld [vmem:[%s2 + $0x10] sm:$0xf]
        %v934 = vld [vmem:[%s2 + $0x14] sm:$0xf]
        %v935 = vld [vmem:[%s2 + $0x18] sm:$0xf]
        %v936 = vld [vmem:[%s2 + $0x1c] sm:$0xf]
        %v937 = vld [vmem:[%s3] sm:$0x3]
        %v938 = vld [vmem:[%s4] sm:$0xf]
        %v939 = vld [vmem:[%s4 + $0x4] sm:$0xf]
        %v940 = vld [vmem:[%s4 + $0x8] sm:$0xf]
        %v941 = vld [vmem:[%s4 + $0xc] sm:$0xf]
        %v942 = vld [vmem:[%s5] sm:$0xf]
        %v943 = vld [vmem:[%s5 + $0x4] sm:$0xf]
        %v944 = vpack.c.bf16 %v870, %v867
        %v945 = vpack.c.bf16 %v878, %v875
        %v946 = vpack.c.bf16 %v886, %v883
        %v947 = vpack.c.bf16 %v894, %v891
        %949 = vset.pattern.permute.xlu0 0
        %950 = vperm.xlu0 %949, %v944
        %v951 = vpop.permute.xlu0 %950
        %954 = vset.pattern.permute.xlu0 0
        %955 = vperm.xlu0 %954, %v945
        %v956 = vpop.permute.xlu0 %955
        %959 = vset.pattern.permute.xlu0 0
        %960 = vperm.xlu0 %959, %v946
        %v961 = vpop.permute.xlu0 %960
        %964 = vset.pattern.permute.xlu0 0
        %965 = vperm.xlu0 %964, %v947
        %v966 = vpop.permute.xlu0 %965
        %v976 = vunpack.c.l.b16 %v929
        %v977 = vunpack.c.l.b16 %v930
        %v978 = vunpack.c.l.b16 %v931
        %v979 = vunpack.c.l.b16 %v932
        %v980 = vunpack.c.l.b16 %v933
        %v981 = vunpack.c.l.b16 %v934
        %v982 = vunpack.c.l.b16 %v935
        %v983 = vunpack.c.l.b16 %v936
        %v984 = vpack.c.b16 %v977, %v976
        %v985 = vpack.c.b16 %v979, %v978
        %v986 = vpack.c.b16 %v981, %v980
        %v987 = vpack.c.b16 %v983, %v982
        %v992 = vmul.bf16 %v951, %v984
        %v993 = vmul.bf16 %v956, %v985
        %v994 = vmul.bf16 %v961, %v986
        %v995 = vmul.bf16 %v966, %v987
        %vm996 = vcmask 523264
        %v998 = vsel %vm996, %v937, 0
        %1000 = vmatprep.subr.bf16.mxu0 0
        %1001 = vmatpush1.bf16.msra.mxu0 %v992
        %1002 = vmatprep.subr.bf16.mxu0 0
        %1003 = vmatpush1.bf16.msra.mxu0 %v993
        %1004 = vmatprep.subr.bf16.mxu0 0
        %1005 = vmatpush1.bf16.msra.mxu0 %v994
        %1006 = vmatprep.subr.bf16.mxu0 0
        %1007 = vmatpush1.bf16.msra.mxu0 %v995
        %1008 = vmatprep.subr.bf16.mxu0 0
        %1009 = vmatpush1.bf16.msra.mxu0 0
        %1010 = vmatprep.subr.bf16.mxu0 0
        %1011 = vmatpush1.bf16.msra.mxu0 0
        %1012 = vmatprep.subr.bf16.mxu0 0
        %1013 = vmatpush1.bf16.msra.mxu0 0
        %1014 = vmatprep.subr.bf16.mxu0 0
        %1015 = vmatpush1.bf16.msra.mxu0 0
        %1016 = vmatprep.subr.bf16.mxu0 0
        %1017 = vmatpush1.bf16.msra.mxu0 0
        %1018 = vmatprep.subr.bf16.mxu0 0
        %1019 = vmatpush1.bf16.msra.mxu0 0
        %1020 = vmatprep.subr.bf16.mxu0 0
        %1021 = vmatpush1.bf16.msra.mxu0 0
        %1022 = vmatprep.subr.bf16.mxu0 0
        %1023 = vmatpush1.bf16.msra.mxu0 0
        %1024 = vmatprep.subr.bf16.mxu0 0
        %1025 = vmatpush1.bf16.msra.mxu0 0
        %1026 = vmatprep.subr.bf16.mxu0 0
        %1027 = vmatpush1.bf16.msra.mxu0 0
        %1028 = vmatprep.subr.bf16.mxu0 0
        %1029 = vmatpush1.bf16.msra.mxu0 0
        %1030 = vmatprep.subr.bf16.mxu0 0
        %1031 = vmatpush1.bf16.msra.mxu0 0
        %1032 = vmatprep.mubr.bf16.mxu0 0
        %1033 = vmatmul.mubr.bf16.gmra.mrb[0].mxu0 %v998
        %v1034 = vpop.f32.mrb[0].mxu0
        %v1035 = vadd.f32 0.0, %v1034
        %v1036 = vpop.f32.mrb[0].mxu0
        %v1037 = vpop.f32.mrb[0].mxu0
        %v1038 = vpop.f32.mrb[0].mxu0
        %1039 = vdwg.mxu0
        %v1040 = vpack.c.bf16 %v1035, %v1035
        %v1045 = vunpack.c.l.b16 %v938
        %v1046 = vunpack.c.l.b16 %v939
        %v1047 = vunpack.c.l.b16 %v940
        %v1048 = vunpack.c.l.b16 %v941
        %v1049 = vpack.c.b16 %v1046, %v1045
        %v1050 = vpack.c.b16 %v1048, %v1047
        %vm1051 = vcmask 31744
        %v1053 = vsel %vm1051, %v1049, 0
        %v1056 = vsel %vm1051, %v1050, 0
        %vm1058 = vcmask 1041408
        %v1060 = vsel %vm1058, %v1040, 0
        %1062 = vmatprep.subr.bf16.mxu0 0
        %1063 = vmatpush1.bf16.msra.mxu0 %v1060
        %1064 = vmatprep.subr.bf16.mxu0 0
        %1065 = vmatpush1.bf16.msra.mxu0 0
        %1066 = vmatprep.subr.bf16.mxu0 0
        %1067 = vmatpush1.bf16.msra.mxu0 0
        %1068 = vmatprep.subr.bf16.mxu0 0
        %1069 = vmatpush1.bf16.msra.mxu0 0
        %1070 = vmatprep.subr.bf16.mxu0 0
        %1071 = vmatpush1.bf16.msra.mxu0 0
        %1072 = vmatprep.subr.bf16.mxu0 0
        %1073 = vmatpush1.bf16.msra.mxu0 0
        %1074 = vmatprep.subr.bf16.mxu0 0
        %1075 = vmatpush1.bf16.msra.mxu0 0
        %1076 = vmatprep.subr.bf16.mxu0 0
        %1077 = vmatpush1.bf16.msra.mxu0 0
        %1078 = vmatprep.subr.bf16.mxu0 0
        %1079 = vmatpush1.bf16.msra.mxu0 0
        %1080 = vmatprep.subr.bf16.mxu0 0
        %1081 = vmatpush1.bf16.msra.mxu0 0
        %1082 = vmatprep.subr.bf16.mxu0 0
        %1083 = vmatpush1.bf16.msra.mxu0 0
        %1084 = vmatprep.subr.bf16.mxu0 0
        %1085 = vmatpush1.bf16.msra.mxu0 0
        %1086 = vmatprep.subr.bf16.mxu0 0
        %1087 = vmatpush1.bf16.msra.mxu0 0
        %1088 = vmatprep.subr.bf16.mxu0 0
        %1089 = vmatpush1.bf16.msra.mxu0 0
        %1090 = vmatprep.subr.bf16.mxu0 0
        %1091 = vmatpush1.bf16.msra.mxu0 0
        %1092 = vmatprep.subr.bf16.mxu0 0
        %1093 = vmatpush1.bf16.msra.mxu0 0
        %1094 = vmatprep.mubr.bf16.mxu0 0
        %1095 = vmatmul.mubr.bf16.gmra.mrb[0].mxu0 %v1053
        %v1096 = vpop.f32.mrb[0].mxu0
        %v1097 = vadd.f32 0.0, %v1096
        %v1098 = vpop.f32.mrb[0].mxu0
        %v1099 = vpop.f32.mrb[0].mxu0
        %v1100 = vadd.f32 0.0, %v1099
        %v1101 = vpop.f32.mrb[0].mxu0
        %1102 = vmatprep.mubr.bf16.mxu0 0
        %1103 = vmatmul.mubr.bf16.gmra.mrb[0].mxu0 %v1056
        %v1104 = vpop.f32.mrb[0].mxu0
        %v1105 = vadd.f32 0.0, %v1104
        %v1106 = vpop.f32.mrb[0].mxu0
        %v1107 = vpop.f32.mrb[0].mxu0
        %v1108 = vadd.f32 0.0, %v1107
        %v1109 = vpop.f32.mrb[0].mxu0
        %1110 = vdwg.mxu0
        %v1111 = vpack.c.bf16 %v1100, %v1097
        %v1112 = vpack.c.bf16 %v1108, %v1105
        %v1115 = vunpack.c.l.b16 %v942
        %v1116 = vunpack.c.l.b16 %v943
        %v1117 = vpack.c.b16 %v1116, %v1115
        %vm1119 = vcmask 130048
        %v1121 = vsel %vm1119, %v1111, 0
        %v1124 = vsel %vm1119, %v1112, 0
        %1126 = vmatprep.subr.bf16.mxu0 0
        %1127 = vmatpush1.bf16.msra.mxu0 %v1117
        %1128 = vmatprep.subr.bf16.mxu0 0
        %1129 = vmatpush1.bf16.msra.mxu0 0
        %1130 = vmatprep.subr.bf16.mxu0 0
        %1131 = vmatpush1.bf16.msra.mxu0 0
        %1132 = vmatprep.subr.bf16.mxu0 0
        %1133 = vmatpush1.bf16.msra.mxu0 0
        %1134 = vmatprep.subr.bf16.mxu0 0
        %1135 = vmatpush1.bf16.msra.mxu0 0
        %1136 = vmatprep.subr.bf16.mxu0 0
        %1137 = vmatpush1.bf16.msra.mxu0 0
        %1138 = vmatprep.subr.bf16.mxu0 0
        %1139 = vmatpush1.bf16.msra.mxu0 0
        %1140 = vmatprep.subr.bf16.mxu0 0
        %1141 = vmatpush1.bf16.msra.mxu0 0
        %1142 = vmatprep.subr.bf16.mxu0 0
        %1143 = vmatpush1.bf16.msra.mxu0 0
        %1144 = vmatprep.subr.bf16.mxu0 0
        %1145 = vmatpush1.bf16.msra.mxu0 0
        %1146 = vmatprep.subr.bf16.mxu0 0
        %1147 = vmatpush1.bf16.msra.mxu0 0
        %1148 = vmatprep.subr.bf16.mxu0 0
        %1149 = vmatpush1.bf16.msra.mxu0 0
        %1150 = vmatprep.subr.bf16.mxu0 0
        %1151 = vmatpush1.bf16.msra.mxu0 0
        %1152 = vmatprep.subr.bf16.mxu0 0
        %1153 = vmatpush1.bf16.msra.mxu0 0
        %1154 = vmatprep.subr.bf16.mxu0 0
        %1155 = vmatpush1.bf16.msra.mxu0 0
        %1156 = vmatprep.subr.bf16.mxu0 0
        %1157 = vmatpush1.bf16.msra.mxu0 0
        %1158 = vmatprep.mubr.bf16.mxu0 0
        %1159 = vmatmul.mubr.bf16.gmra.mrb[0].mxu0 %v1121
        %v1160 = vpop.f32.mrb[0].mxu0
        %v1161 = vadd.f32 0.0, %v1160
        %v1162 = vpop.f32.mrb[0].mxu0
        %v1163 = vpop.f32.mrb[0].mxu0
        %v1164 = vadd.f32 0.0, %v1163
        %v1165 = vpop.f32.mrb[0].mxu0
        %1166 = vmatprep.mubr.bf16.mxu0 0
        %1167 = vmatmul.mubr.bf16.gmra.mrb[0].mxu0 %v1124
        %v1168 = vpop.f32.mrb[0].mxu0
        %v1169 = vadd.f32 0.0, %v1168
        %v1170 = vpop.f32.mrb[0].mxu0
        %v1171 = vpop.f32.mrb[0].mxu0
        %v1172 = vadd.f32 0.0, %v1171
        %v1173 = vpop.f32.mrb[0].mxu0
        %1174 = vdwg.mxu0
        %v1175 = vmax.f32 %v1161, %v1164
        %v1176 = vmax.f32 %v1169, %v1172
        %v1177 = vmax.f32 %v1175, %v1176
        %1178 = vmax.xlane.f32.xlu0 %v1177
        %v1179 = vpop.xlane.xlu0 %1178
        %v1180 = vrot.slane %v1179, 4
        %v1181 = vmax.f32 %v1179, %v1180
        %v1182 = vrot.slane %v1181, 2
        %v1183 = vmax.f32 %v1181, %v1182
        %v1184 = vrot.slane %v1183, 1
        %v1185 = vmax.f32 %v1183, %v1184
        %s1186 = vtos %v1185
        %v1187 = vstv %s1186
        %v1188 = vsub.f32 %v1161, %v1187
        %v1189 = vsub.f32 %v1164, %v1187
        %v1190 = vsub.f32 %v1169, %v1187
        %v1191 = vsub.f32 %v1172, %v1187
        %v1192 = vmul.f32 %v1188, 1.442695
        %v1193 = vpow.pop %v1192
        %v1194 = vmul.f32 %v1189, 1.442695
        %v1195 = vpow.pop %v1194
        %v1196 = vmul.f32 %v1190, 1.442695
        %v1197 = vpow.pop %v1196
        %v1198 = vmul.f32 %v1191, 1.442695
        %v1199 = vpow.pop %v1198
        %1200 = vadd.xlane.f32.xlu0 %v1193
        %v1201 = vpop.xlane.xlu0 %1200
        %1202 = vadd.xlane.f32.xlu0 %v1195
        %v1203 = vpop.xlane.xlu0 %1202
        %1204 = vadd.xlane.f32.xlu0 %v1197
        %v1205 = vpop.xlane.xlu0 %1204
        %1206 = vadd.xlane.f32.xlu0 %v1199
        %v1207 = vpop.xlane.xlu0 %1206
        %v1208 = vadd.f32 %v1201, %v1203
        %v1209 = vadd.f32 %v1208, %v1205
        %v1210 = vadd.f32 %v1209, %v1207
        %v1211 = vrot.slane %v1210, 4
        %v1212 = vadd.f32 %v1210, %v1211
        %v1213 = vrot.slane %v1212, 2
        %v1214 = vadd.f32 %v1212, %v1213
        %v1215 = vrot.slane %v1214, 1
        %v1216 = vadd.f32 %v1214, %v1215
        %v1217 = vrcp.pop %v1216
        %v1218 = vmul.f32 %v1193, %v1217
        %v1219 = vmul.f32 %v1195, %v1217
        %v1220 = vmul.f32 %v1197, %v1217
        %v1221 = vmul.f32 %v1199, %v1217
        %1222 = vst [vmem:[%s284] sm:$0xff] %v1218
        %1223 = vst [vmem:[%s284 + $0x8] sm:$0xff] %v1219
        %1224 = vst [vmem:[%s284 + $0x10] sm:$0xff] %v1220
        %1225 = vst [vmem:[%s284 + $0x18] sm:$0xff] %v1221
        %v1226 = vpack.c.bf16 %v902, %v899
        %v1227 = vpack.c.bf16 %v910, %v907
        %v1228 = vpack.c.bf16 %v918, %v915
        %v1229 = vpack.c.bf16 %v926, %v923
        %1231 = vset.pattern.permute.xlu0 0
        %1232 = vperm.xlu0 %1231, %v1226
        %v1233 = vpop.permute.xlu0 %1232
        %1236 = vset.pattern.permute.xlu0 0
        %1237 = vperm.xlu0 %1236, %v1227
        %v1238 = vpop.permute.xlu0 %1237
        %1241 = vset.pattern.permute.xlu0 0
        %1242 = vperm.xlu0 %1241, %v1228
        %v1243 = vpop.permute.xlu0 %1242
        %1246 = vset.pattern.permute.xlu0 0
        %1247 = vperm.xlu0 %1246, %v1229
        %v1248 = vpop.permute.xlu0 %1247
        %v1250 = vmul.bf16 %v1233, %v984
        %v1251 = vmul.bf16 %v1238, %v985
        %v1252 = vmul.bf16 %v1243, %v986
        %v1253 = vmul.bf16 %v1248, %v987
        %1254 = vmatprep.subr.bf16.mxu0 0
        %1255 = vmatpush1.bf16.msra.mxu0 %v1250
        %1256 = vmatprep.subr.bf16.mxu0 0
        %1257 = vmatpush1.bf16.msra.mxu0 %v1251
        %1258 = vmatprep.subr.bf16.mxu0 0
        %1259 = vmatpush1.bf16.msra.mxu0 %v1252
        %1260 = vmatprep.subr.bf16.mxu0 0
        %1261 = vmatpush1.bf16.msra.mxu0 %v1253
        %1262 = vmatprep.subr.bf16.mxu0 0
        %1263 = vmatpush1.bf16.msra.mxu0 0
        %1264 = vmatprep.subr.bf16.mxu0 0
        %1265 = vmatpush1.bf16.msra.mxu0 0
        %1266 = vmatprep.subr.bf16.mxu0 0
        %1267 = vmatpush1.bf16.msra.mxu0 0
        %1268 = vmatprep.subr.bf16.mxu0 0
        %1269 = vmatpush1.bf16.msra.mxu0 0
        %1270 = vmatprep.subr.bf16.mxu0 0
        %1271 = vmatpush1.bf16.msra.mxu0 0
        %1272 = vmatprep.subr.bf16.mxu0 0
        %1273 = vmatpush1.bf16.msra.mxu0 0
        %1274 = vmatprep.subr.bf16.mxu0 0
        %1275 = vmatpush1.bf16.msra.mxu0 0
        %1276 = vmatprep.subr.bf16.mxu0 0
        %1277 = vmatpush1.bf16.msra.mxu0 0
        %1278 = vmatprep.subr.bf16.mxu0 0
        %1279 = vmatpush1.bf16.msra.mxu0 0
        %1280 = vmatprep.subr.bf16.mxu0 0
        %1281 = vmatpush1.bf16.msra.mxu0 0
        %1282 = vmatprep.subr.bf16.mxu0 0
        %1283 = vmatpush1.bf16.msra.mxu0 0
        %1284 = vmatprep.subr.bf16.mxu0 0
        %1285 = vmatpush1.bf16.msra.mxu0 0
        %1286 = vmatprep.mubr.bf16.mxu0 0
        %1287 = vmatmul.mubr.bf16.gmra.mrb[0].mxu0 %v998
        %v1288 = vpop.f32.mrb[0].mxu0
        %v1289 = vadd.f32 0.0, %v1288
        %v1290 = vpop.f32.mrb[0].mxu0
        %v1291 = vpop.f32.mrb[0].mxu0
        %v1292 = vpop.f32.mrb[0].mxu0
        %1293 = vdwg.mxu0
        %v1294 = vpack.c.bf16 %v1289, %v1289
        %v1296 = vsel %vm1058, %v1294, 0
        %1298 = vmatprep.subr.bf16.mxu0 0
        %1299 = vmatpush1.bf16.msra.mxu0 %v1296
        %1300 = vmatprep.subr.bf16.mxu0 0
        %1301 = vmatpush1.bf16.msra.mxu0 0
        %1302 = vmatprep.subr.bf16.mxu0 0
        %1303 = vmatpush1.bf16.msra.mxu0 0
        %1304 = vmatprep.subr.bf16.mxu0 0
        %1305 = vmatpush1.bf16.msra.mxu0 0
        %1306 = vmatprep.subr.bf16.mxu0 0
        %1307 = vmatpush1.bf16.msra.mxu0 0
        %1308 = vmatprep.subr.bf16.mxu0 0
        %1309 = vmatpush1.bf16.msra.mxu0 0
        %1310 = vmatprep.subr.bf16.mxu0 0
        %1311 = vmatpush1.bf16.msra.mxu0 0
        %1312 = vmatprep.subr.bf16.mxu0 0
        %1313 = vmatpush1.bf16.msra.mxu0 0
        %1314 = vmatprep.subr.bf16.mxu0 0
        %1315 = vmatpush1.bf16.msra.mxu0 0
        %1316 = vmatprep.subr.bf16.mxu0 0
        %1317 = vmatpush1.bf16.msra.mxu0 0
        %1318 = vmatprep.subr.bf16.mxu0 0
        %1319 = vmatpush1.bf16.msra.mxu0 0
        %1320 = vmatprep.subr.bf16.mxu0 0
        %1321 = vmatpush1.bf16.msra.mxu0 0
        %1322 = vmatprep.subr.bf16.mxu0 0
        %1323 = vmatpush1.bf16.msra.mxu0 0
        %1324 = vmatprep.subr.bf16.mxu0 0
        %1325 = vmatpush1.bf16.msra.mxu0 0
        %1326 = vmatprep.subr.bf16.mxu0 0
        %1327 = vmatpush1.bf16.msra.mxu0 0
        %1328 = vmatprep.subr.bf16.mxu0 0
        %1329 = vmatpush1.bf16.msra.mxu0 0
        %1330 = vmatprep.mubr.bf16.mxu0 0
        %1331 = vmatmul.mubr.bf16.gmra.mrb[0].mxu0 %v1053
        %v1332 = vpop.f32.mrb[0].mxu0
        %v1333 = vadd.f32 0.0, %v1332
        %v1334 = vpop.f32.mrb[0].mxu0
        %v1335 = vpop.f32.mrb[0].mxu0
        %v1336 = vadd.f32 0.0, %v1335
        %v1337 = vpop.f32.mrb[0].mxu0
        %1338 = vmatprep.mubr.bf16.mxu0 0
        %1339 = vmatmul.mubr.bf16.gmra.mrb[0].mxu0 %v1056
        %v1340 = vpop.f32.mrb[0].mxu0
        %v1341 = vadd.f32 0.0, %v1340
        %v1342 = vpop.f32.mrb[0].mxu0
        %v1343 = vpop.f32.mrb[0].mxu0
        %v1344 = vadd.f32 0.0, %v1343
        %v1345 = vpop.f32.mrb[0].mxu0
        %1346 = vdwg.mxu0
        %v1347 = vpack.c.bf16 %v1336, %v1333
        %v1348 = vpack.c.bf16 %v1344, %v1341
        %v1350 = vsel %vm1119, %v1347, 0
        %v1353 = vsel %vm1119, %v1348, 0
        %1355 = vmatprep.subr.bf16.mxu0 0
        %1356 = vmatpush1.bf16.msra.mxu0 %v1117
        %1357 = vmatprep.subr.bf16.mxu0 0
        %1358 = vmatpush1.bf16.msra.mxu0 0
        %1359 = vmatprep.subr.bf16.mxu0 0
        %1360 = vmatpush1.bf16.msra.mxu0 0
        %1361 = vmatprep.subr.bf16.mxu0 0
        %1362 = vmatpush1.bf16.msra.mxu0 0
        %1363 = vmatprep.subr.bf16.mxu0 0
        %1364 = vmatpush1.bf16.msra.mxu0 0
        %1365 = vmatprep.subr.bf16.mxu0 0
        %1366 = vmatpush1.bf16.msra.mxu0 0
        %1367 = vmatprep.subr.bf16.mxu0 0
        %1368 = vmatpush1.bf16.msra.mxu0 0
        %1369 = vmatprep.subr.bf16.mxu0 0
        %1370 = vmatpush1.bf16.msra.mxu0 0
        %1371 = vmatprep.subr.bf16.mxu0 0
        %1372 = vmatpush1.bf16.msra.mxu0 0
        %1373 = vmatprep.subr.bf16.mxu0 0
        %1374 = vmatpush1.bf16.msra.mxu0 0
        %1375 = vmatprep.subr.bf16.mxu0 0
        %1376 = vmatpush1.bf16.msra.mxu0 0
        %1377 = vmatprep.subr.bf16.mxu0 0
        %1378 = vmatpush1.bf16.msra.mxu0 0
        %1379 = vmatprep.subr.bf16.mxu0 0
        %1380 = vmatpush1.bf16.msra.mxu0 0
        %1381 = vmatprep.subr.bf16.mxu0 0
        %1382 = vmatpush1.bf16.msra.mxu0 0
        %1383 = vmatprep.subr.bf16.mxu0 0
        %1384 = vmatpush1.bf16.msra.mxu0 0
        %1385 = vmatprep.subr.bf16.mxu0 0
        %1386 = vmatpush1.bf16.msra.mxu0 0
        %1387 = vmatprep.mubr.bf16.mxu0 0
        %1388 = vmatmul.mubr.bf16.gmra.mrb[0].mxu0 %v1350
        %v1389 = vpop.f32.mrb[0].mxu0
        %v1390 = vadd.f32 0.0, %v1389
        %v1391 = vpop.f32.mrb[0].mxu0
        %v1392 = vpop.f32.mrb[0].mxu0
        %v1393 = vadd.f32 0.0, %v1392
        %v1394 = vpop.f32.mrb[0].mxu0
        %1395 = vmatprep.mubr.bf16.mxu0 0
        %1396 = vmatmul.mubr.bf16.gmra.mrb[0].mxu0 %v1353
        %v1397 = vpop.f32.mrb[0].mxu0
        %v1398 = vadd.f32 0.0, %v1397
        %v1399 = vpop.f32.mrb[0].mxu0
        %v1400 = vpop.f32.mrb[0].mxu0
        %v1401 = vadd.f32 0.0, %v1400
        %v1402 = vpop.f32.mrb[0].mxu0
        %1403 = vdwg.mxu0
        %v1404 = vmax.f32 %v1390, %v1393
        %v1405 = vmax.f32 %v1398, %v1401
        %v1406 = vmax.f32 %v1404, %v1405
        %1407 = vmax.xlane.f32.xlu0 %v1406
        %v1408 = vpop.xlane.xlu0 %1407
        %v1409 = vrot.slane %v1408, 4
        %v1410 = vmax.f32 %v1408, %v1409
        %v1411 = vrot.slane %v1410, 2
        %v1412 = vmax.f32 %v1410, %v1411
        %v1413 = vrot.slane %v1412, 1
        %v1414 = vmax.f32 %v1412, %v1413
        %s1415 = vtos %v1414
        %v1416 = vstv %s1415
        %v1417 = vsub.f32 %v1390, %v1416
        %v1418 = vsub.f32 %v1393, %v1416
        %v1419 = vsub.f32 %v1398, %v1416
        %v1420 = vsub.f32 %v1401, %v1416
        %v1421 = vmul.f32 %v1417, 1.442695
        %v1422 = vpow.pop %v1421
        %v1423 = vmul.f32 %v1418, 1.442695
        %v1424 = vpow.pop %v1423
        %v1425 = vmul.f32 %v1419, 1.442695
        %v1426 = vpow.pop %v1425
        %v1427 = vmul.f32 %v1420, 1.442695
        %v1428 = vpow.pop %v1427
        %1429 = vadd.xlane.f32.xlu0 %v1422
        %v1430 = vpop.xlane.xlu0 %1429
        %1431 = vadd.xlane.f32.xlu0 %v1424
        %v1432 = vpop.xlane.xlu0 %1431
        %1433 = vadd.xlane.f32.xlu0 %v1426
        %v1434 = vpop.xlane.xlu0 %1433
        %1435 = vadd.xlane.f32.xlu0 %v1428
        %v1436 = vpop.xlane.xlu0 %1435
        %v1437 = vadd.f32 %v1430, %v1432
        %v1438 = vadd.f32 %v1437, %v1434
        %v1439 = vadd.f32 %v1438, %v1436
        %v1440 = vrot.slane %v1439, 4
        %v1441 = vadd.f32 %v1439, %v1440
        %v1442 = vrot.slane %v1441, 2
        %v1443 = vadd.f32 %v1441, %v1442
        %v1444 = vrot.slane %v1443, 1
        %v1445 = vadd.f32 %v1443, %v1444
        %v1446 = vrcp.pop %v1445
        %v1447 = vmul.f32 %v1422, %v1446
        %v1448 = vmul.f32 %v1424, %v1446
        %v1449 = vmul.f32 %v1426, %v1446
        %v1450 = vmul.f32 %v1428, %v1446
        %s1451 = scalar_lea.vmem %s284, 32 [#allocation7]
        %1452 = vst [vmem:[%s1451] sm:$0xff] %v1447
        %1453 = vst [vmem:[%s1451 + $0x8] sm:$0xff] %v1448
        %1454 = vst [vmem:[%s1451 + $0x10] sm:$0xff] %v1449
        %1455 = vst [vmem:[%s1451 + $0x18] sm:$0xff] %v1450
        %s1456 = sand.u32 %s163, 1
        %s1457 = scalar_lea.sflag [#allocation4], %s1456
        %s1458 = sand.u32 %s163, 1
        %s1459 = smul.addr %s1458, 64
        %s1460 = scalar_lea.vmem [#allocation7], %s1459
        // Predicated region
        $region53: #{tpu_custom_call.1} parent=43 // pred_check
          %p1461 = pneg %p173
        $region54: #{tpu_custom_call.1} parent=43 // pred_check_branch
          %1463 = sbr.rel (%p1461) target = $region56
        $region55: #{tpu_custom_call.1} parent=43 // pred_region
          %s1464 = smul.u32 2, %s24
          %s1466 = ssub.s32 1024, 1024
          %1467 = vsyncadd %s1457, %s1466
          %s1468 = smul.addr %s1464, 4
          %s1469 = smul.addr %s1468, 128
          %s1470 = scalar_lea.hbm %s6, %s1469
          %s1471 = sshll.u32 %s1460, 4
          %s1472 = int_to_ptr.vmem [resolvable:$true] %s1471
          %1477 = dma.vmem_to_hbm [thread:$0]  %s1472, 1024, %s1470, %s1457, 128, 128, 8
        $region56: #{tpu_custom_call.1} parent=43 // pred_fallthru
          _
      $region44: #{tpu_custom_call.1} parent=5 // pred_fallthru
        _
      %p1478 = scmp.le.s32.totalorder 2, %s19
      // Predicated region
      $region57: #{tpu_custom_call.1} parent=5 // pred_check
        %p1479 = pneg %p1478
      $region58: #{tpu_custom_call.1} parent=5 // pred_check_branch
        %1481 = sbr.rel (%p1479) target = $region60
      $region59: #{tpu_custom_call.1} parent=5 // pred_region
        %s1482 = ssub.s32 %s19, 2
        // Predicated region
        $region61: #{tpu_custom_call.1} parent=59 // pred_check
          %p1483 = pneg %p179
        $region62: #{tpu_custom_call.1} parent=59 // pred_check_branch
          %1485 = sbr.rel (%p1483) target = $region64
        $region63: #{tpu_custom_call.1} parent=59 // pred_region
          %s1486 = sand.u32 %s164, 1
          %s1487 = scalar_lea.sflag [#allocation4], %s1486
          %s1488 = sand.u32 %s164, 1
          %s1489 = smul.addr %s1488, 64
          %s1490 = scalar_lea.vmem [#allocation7], %s1489
          %1491 = dma.done %s1487, 1024
        $region64: #{tpu_custom_call.1} parent=59 // pred_fallthru
          _
      $region60: #{tpu_custom_call.1} parent=5 // pred_fallthru
        _
    $region6: #{tpu_custom_call.1} parent=1 // loop_footer
      %s23 = sadd.s32 1, %s19
    $region7: #{tpu_custom_call.1} parent=1 // loop_footer_branch
      %18 = sbr.rel target = $region3
    $region8: #{tpu_custom_call.1} parent=1 // loop_exit
      _
    %1492 = vsyncpa [#allocation3], 1
    %s1493 = scalar_lea.sflag [#allocation3], 1
    %1494 = vsyncpa %s1493, 1
    %1495 = vsyncpa [#allocation6], 1
    %1496 = vsyncpa [#allocation4], 1
    %s1497 = scalar_lea.sflag [#allocation4], 1
    %1498 = vsyncpa %s1497, 1

</llo_original>
